<compile_context>
chip_gen: v7x
topology: tpu7x:2x2x1
jax: 0.10.0
libtpu: 0.0.40
codegen_flags: <defaults>
</compile_context>

<pallas_src>
import functools

import jax
import jax.numpy as jnp
from jax import lax
from jax.experimental import pallas as pl
from jax.experimental.pallas import tpu as pltpu


def _pick_tb(T, N, max_tb=32):
    """Largest divisor of T (<= max_tb) whose row-block (TB*N) is 8-aligned."""
    cands = [d for d in range(1, min(T, max_tb) + 1)
             if T % d == 0 and ((d * N) % 8 == 0 or d == T)]
    return max(cands) if cands else T


def _fused_lstm_ln_kernel(x_ref, wih_ref, whh_ref, b_ref, gamma_ref, beta_ref,
                          y_ref, hN_ref, cN_ref,
                          h_sc, c_sc, act_sc,
                          *, hidden, batch, tb_steps, num_layers, eps):
    """grid = (num_layers, T // TB): one grid step = one layer x TB timesteps."""
    layer = pl.program_id(0)
    tb = pl.program_id(1)
    ntb = pl.num_programs(1)
    H, N, TB = hidden, batch, tb_steps
    TBN = TB * N

    # New layer -> reset the recurrent (h, c) carry to zeros (hidden=None).
    @pl.when(tb == 0)
    def _():
        h_sc[...] = jnp.zeros_like(h_sc)
        c_sc[...] = jnp.zeros_like(c_sc)

    row0 = pl.multiple_of(tb * TBN, TBN)

    # Layer input block: layer 0 reads the kernel input; deeper layers read the
    # previous layer's LayerNorm'd output held resident in the VMEM scratch.
    if num_layers == 1:
        x_blk = x_ref[...].astype(jnp.float32)                     # (TBN, Fin)
    else:
        x_blk = jnp.where(layer == 0,
                          x_ref[...].astype(jnp.float32),
                          act_sc[pl.ds(row0, TBN)])                # (TBN, H)

    # Hoisted input projection: one big MXU matmul for the whole time block.
    # gates_x = X @ W_ih^T + (b_ih + b_hh)
    gx = jnp.dot(x_blk.astype(jnp.bfloat16), wih_ref[0],
                 preferred_element_type=jnp.float32) + b_ref[0]    # (TBN, 4H)

    whh = whh_ref[0]            # (H, 4H) bf16, resident across the block
    gamma = gamma_ref[0]        # (1, H) f32
    beta = beta_ref[0]          # (1, H) f32

    h = h_sc[...]               # (N, H) f32
    c = c_sc[...]               # (N, H) f32
    ys = []
    # Short, statically-unrolled recurrence: only h @ W_hh^T + gates are serial.
    for i in range(TB):
        gates = gx[i * N:(i + 1) * N, :] + jnp.dot(
            h.astype(jnp.bfloat16), whh, preferred_element_type=jnp.float32)
        # PyTorch LSTM gate order: i, f, g, o.
        # sigmoid(z) == 0.5*(tanh(z/2)+1) exactly -> one EUP op per gate.
        i_g = 0.5 * (jnp.tanh(0.5 * gates[:, 0 * H:1 * H]) + 1.0)
        f_g = 0.5 * (jnp.tanh(0.5 * gates[:, 1 * H:2 * H]) + 1.0)
        g_g = jnp.tanh(gates[:, 2 * H:3 * H])
        o_g = 0.5 * (jnp.tanh(0.5 * gates[:, 3 * H:4 * H]) + 1.0)
        c = f_g * c + i_g * g_g
        h = o_g * jnp.tanh(c)
        # LayerNorm over the feature dim (nn.LayerNorm defaults: biased var, eps).
        mean = jnp.mean(h, axis=-1, keepdims=True)
        xm = h - mean
        var = jnp.mean(xm * xm, axis=-1, keepdims=True)
        ys.append(xm * lax.rsqrt(var + eps) * gamma + beta)

    h_sc[...] = h
    c_sc[...] = c

    # One lane-dense blocked store per (layer, time-block).
    y_blk = jnp.concatenate(ys, axis=0)                            # (TBN, H) f32
    act_sc[pl.ds(row0, TBN)] = y_blk         # feeds the next layer (stays in VMEM)
    y_ref[...] = y_blk.astype(y_ref.dtype)   # last layer's pass is what lands in HBM

    # Final (pre-LayerNorm) hidden state of this layer, written once per layer.
    @pl.when(tb == ntb - 1)
    def _():
        hN_ref[0] = h.astype(hN_ref.dtype)
        cN_ref[0] = c.astype(cN_ref.dtype)


def lstm_ln_fused(x_rows, wih_t, whh_t, b, gamma, beta, *, seq_len, batch,
                  eps=1e-5, max_tb=32):
    """
    x_rows: (T*N, Fin) time-major, row-flattened input
    wih_t:  (L, Fin, 4H) bf16     whh_t: (L, H, 4H) bf16
    b:      (L, 1, 4H)  f32       gamma/beta: (L, 1, H) f32
    Returns: y (T*N, H), h_n (L, N, H), c_n (L, N, H)
    """
    T, N = seq_len, batch
    TN, Fin = x_rows.shape
    assert TN == T * N
    L, _, H4 = whh_t.shape
    H = H4 // 4
    if L > 1:
        # The PyTorch module builds every layer with `input_size`.
        assert Fin == H, "stacked LayerNormRNN layers need input_size == hidden_size"

    TB = _pick_tb(T, N, max_tb)
    TBN = TB * N
    # TODO(synk): the inter-layer activation scratch holds the full (T*N, H)
    # sequence in VMEM; for very long sequences / large H, split T across calls
    # and raise vmem_limit_bytes (v7x has only 64 MiB).

    kernel = functools.partial(_fused_lstm_ln_kernel, hidden=H, batch=N,
                               tb_steps=TB, num_layers=L, eps=eps)

    grid_spec = pltpu.PrefetchScalarGridSpec(
        num_scalar_prefetch=0,
        grid=(L, T // TB),
        in_specs=[
            pl.BlockSpec((TBN, Fin), lambda l, t: (t, 0)),          # x rows
            pl.BlockSpec((1, Fin, 4 * H), lambda l, t: (l, 0, 0)),  # W_ih^T
            pl.BlockSpec((1, H, 4 * H), lambda l, t: (l, 0, 0)),    # W_hh^T
            pl.BlockSpec((1, 1, 4 * H), lambda l, t: (l, 0, 0)),    # b_ih + b_hh
            pl.BlockSpec((1, 1, H), lambda l, t: (l, 0, 0)),        # LN gamma
            pl.BlockSpec((1, 1, H), lambda l, t: (l, 0, 0)),        # LN beta
        ],
        out_specs=[
            pl.BlockSpec((TBN, H), lambda l, t: (t, 0)),            # y rows
            pl.BlockSpec((1, N, H), lambda l, t: (l, 0, 0)),        # h_n per layer
            pl.BlockSpec((1, N, H), lambda l, t: (l, 0, 0)),        # c_n per layer
        ],
        scratch_shapes=[
            pltpu.VMEM((N, H), jnp.float32),        # h carry
            pltpu.VMEM((N, H), jnp.float32),        # c carry
            pltpu.VMEM((T * N, H), jnp.float32),    # inter-layer activations
        ],
    )
    return pl.pallas_call(
        kernel,
        out_shape=(
            jax.ShapeDtypeStruct((T * N, H), x_rows.dtype),
            jax.ShapeDtypeStruct((L, N, H), x_rows.dtype),
            jax.ShapeDtypeStruct((L, N, H), x_rows.dtype),
        ),
        grid_spec=grid_spec,
        compiler_params=pltpu.CompilerParams(
            # Both axes carry a recurrence (layer l+1 reads layer l's output,
            # time t+1 reads (h, c) of t) -> keep them sequential.
            # TODO(synk): for large N, add a leading "parallel" batch-tile axis
            # to use v7x's second TensorCore.
            dimension_semantics=("arbitrary", "arbitrary")),
    )(x_rows, wih_t, whh_t, b, gamma, beta)


def layer_norm_rnn_forward(x_ntf, params, *, eps=1e-5):
    """Forward of LayerNormRNN. x_ntf: N x T x F (batch-first, like the module)."""
    N, T, F = x_ntf.shape
    x_rows = jnp.transpose(x_ntf, (1, 0, 2)).reshape(T * N, F)  # time-major rows
    y_rows, h_n, c_n = lstm_ln_fused(
        x_rows, params["wih_t"], params["whh_t"], params["b"],
        params["gamma"], params["beta"], seq_len=T, batch=N, eps=eps)
    y = jnp.transpose(y_rows.reshape(T, N, -1), (1, 0, 2))
    # PyTorch LSTM hidden format per layer: (h_n, c_n), each (num_dirs=1, N, H)
    ret_hidden = [(h_n[i][None], c_n[i][None]) for i in range(h_n.shape[0])]
    # TODO(synk): external initial `hidden` and train-mode inter-layer Dropout
    # are not implemented (module defaults: hidden=None, p=0.0 -> identity).
    return y, ret_hidden


def init_params(key, input_size, hidden_size, num_layers):
    """Deterministic init matching PyTorch LSTM / LayerNorm parameter shapes."""
    k = 1.0 / (hidden_size ** 0.5)
    wih, whh, b = [], [], []
    for _ in range(num_layers):
        key, k0, k1, k2, k3 = jax.random.split(key, 5)
        wih_l = jax.random.uniform(k0, (4 * hidden_size, input_size),
                                   minval=-k, maxval=k, dtype=jnp.float32)
        whh_l = jax.random.uniform(k1, (4 * hidden_size, hidden_size),
                                   minval=-k, maxval=k, dtype=jnp.float32)
        bih = jax.random.uniform(k2, (4 * hidden_size,),
                                 minval=-k, maxval=k, dtype=jnp.float32)
        bhh = jax.random.uniform(k3, (4 * hidden_size,),
                                 minval=-k, maxval=k, dtype=jnp.float32)
        wih.append(wih_l.T)                    # (Fin, 4H)
        whh.append(whh_l.T)                    # (H, 4H)
        b.append((bih + bhh)[None, :])         # (1, 4H)
    return dict(
        wih_t=jnp.stack(wih).astype(jnp.bfloat16),   # bf16 MXU inputs
        whh_t=jnp.stack(whh).astype(jnp.bfloat16),
        b=jnp.stack(b),                              # f32
        gamma=jnp.ones((num_layers, 1, hidden_size), jnp.float32),
        beta=jnp.zeros((num_layers, 1, hidden_size), jnp.float32),
    )


if __name__ == "__main__":
    N, T = 2, 8
    input_size = hidden_size = 32     # module requires input_size == hidden_size
    num_layers = 2

    key = jax.random.PRNGKey(0)
    key, kx = jax.random.split(key)
    x = jax.random.normal(kx, (N, T, input_size), dtype=jnp.float32)
    params = init_params(key, input_size, hidden_size, num_layers)

    out, hidden = layer_norm_rnn_forward(x, params)
    out = jax.block_until_ready(out)
    for h_n, c_n in hidden:
        jax.block_until_ready(h_n)
        jax.block_until_ready(c_n)

    assert out.shape == (N, T, hidden_size)
    assert len(hidden) == num_layers
    assert hidden[0][0].shape == (1, N, hidden_size)
    print("KERNEL_OK")
</pallas_src>

<mosaic_0001>
module attributes {stable_mosaic.version = 11 : i64} {
  func.func @_fused_lstm_ln_kernel(%arg0: i32, %arg1: i32, %arg2: memref<16x32xf32, #tpu.memory_space<vmem>>, %arg3: memref<1x32x128xbf16, #tpu.memory_space<vmem>>, %arg4: memref<1x32x128xbf16, #tpu.memory_space<vmem>>, %arg5: memref<1x1x128xf32, #tpu.memory_space<vmem>>, %arg6: memref<1x1x32xf32, #tpu.memory_space<vmem>>, %arg7: memref<1x1x32xf32, #tpu.memory_space<vmem>>, %arg8: memref<16x32xf32, #tpu.memory_space<vmem>>, %arg9: memref<1x2x32xf32, #tpu.memory_space<vmem>>, %arg10: memref<1x2x32xf32, #tpu.memory_space<vmem>>, %arg11: memref<2x32xf32, #tpu.memory_space<vmem>>, %arg12: memref<2x32xf32, #tpu.memory_space<vmem>>, %arg13: memref<16x32xf32, #tpu.memory_space<vmem>>) attributes {dimension_semantics = [#tpu.dimension_semantics<arbitrary>, #tpu.dimension_semantics<arbitrary>], iteration_bounds = array<i64: 2, 1>, scalar_prefetch = 0 : i64, scratch_operands = 3 : i64, tpu.core_type = #tpu.core_type<tc>, window_params = [{transform_indices = @transform_0, window_bounds = array<i64: 16, 32>}, {transform_indices = @transform_1, window_bounds = array<i64: 1, 32, 128>}, {transform_indices = @transform_2, window_bounds = array<i64: 1, 32, 128>}, {transform_indices = @transform_3, window_bounds = array<i64: 1, 1, 128>}, {transform_indices = @transform_4, window_bounds = array<i64: 1, 1, 32>}, {transform_indices = @transform_5, window_bounds = array<i64: 1, 1, 32>}, {transform_indices = @transform_6, window_bounds = array<i64: 16, 32>}, {transform_indices = @transform_7, window_bounds = array<i64: 1, 2, 32>}, {transform_indices = @transform_8, window_bounds = array<i64: 1, 2, 32>}]} {
    %c0_i32 = arith.constant 0 : i32
    %0 = arith.cmpi eq, %arg1, %c0_i32 : i32
    %1 = arith.extui %0 : i1 to i32
    %c0_i32_0 = arith.constant 0 : i32
    %2 = arith.cmpi ne, %1, %c0_i32_0 : i32
    scf.if %2 {
      %cst_152 = arith.constant 0.000000e+00 : f32
      %475 = vector.broadcast %cst_152 : f32 to vector<2x32xf32>
      %c0_153 = arith.constant 0 : index
      %c0_154 = arith.constant 0 : index
      %476 = vector.load %arg11[%c0_153, %c0_154] : memref<2x32xf32, #tpu.memory_space<vmem>>, vector<2x32xf32>
      tpu.vector_store %arg11[%c0_153, %c0_154], %475 {strides = array<i32>} : memref<2x32xf32, #tpu.memory_space<vmem>>, vector<2x32xf32>,
      %cst_155 = arith.constant 0.000000e+00 : f32
      %477 = vector.broadcast %cst_155 : f32 to vector<2x32xf32>
      %c0_156 = arith.constant 0 : index
      %c0_157 = arith.constant 0 : index
      %478 = vector.load %arg12[%c0_156, %c0_157] : memref<2x32xf32, #tpu.memory_space<vmem>>, vector<2x32xf32>
      tpu.vector_store %arg12[%c0_156, %c0_157], %477 {strides = array<i32>} : memref<2x32xf32, #tpu.memory_space<vmem>>, vector<2x32xf32>,
    } else {
    }
    %c16_i32 = arith.constant 16 : i32
    %3 = arith.muli %arg1, %c16_i32 : i32
    %4 = tpu.assume_multiple %3, 16 : i32
    %c0_i32_1 = arith.constant 0 : i32
    %5 = arith.cmpi eq, %arg0, %c0_i32_1 : i32
    %c0 = arith.constant 0 : index
    %c0_2 = arith.constant 0 : index
    %6 = vector.load %arg2[%c0, %c0_2] : memref<16x32xf32, #tpu.memory_space<vmem>>, vector<16x32xf32>
    %7 = arith.index_cast %4 : i32 to index
    %c0_3 = arith.constant 0 : index
    %8 = vector.load %arg13[%7, %c0_3] : memref<16x32xf32, #tpu.memory_space<vmem>>, vector<16x32xf32>
    %9 = arith.select %5, %6, %8 : vector<16x32xf32>
    %10 = arith.truncf %9 : vector<16x32xf32> to vector<16x32xbf16>
    %c0_4 = arith.constant 0 : index
    %c0_5 = arith.constant 0 : index
    %c0_6 = arith.constant 0 : index
    %11 = vector.load %arg3[%c0_4, %c0_5, %c0_6] : memref<1x32x128xbf16, #tpu.memory_space<vmem>>, vector<1x32x128xbf16>
    %12 = vector.shape_cast %11 : vector<1x32x128xbf16> to vector<32x128xbf16>
    %cst = arith.constant dense<0.000000e+00> : vector<16x128xf32>
    %13 = tpu.matmul %10, %12, %cst {dimension_numbers = #tpu.dot_dimension_numbers<[1], [0], [0], [1], [0, 0, 1, 1], [], []>} : vector<16x32xbf16>, vector<32x128xbf16>, vector<16x128xf32> -> vector<16x128xf32>
    %c0_7 = arith.constant 0 : index
    %c0_8 = arith.constant 0 : index
    %c0_9 = arith.constant 0 : index
    %14 = vector.load %arg5[%c0_7, %c0_8, %c0_9] : memref<1x1x128xf32, #tpu.memory_space<vmem>>, vector<1x1x128xf32>
    %15 = vector.shape_cast %14 : vector<1x1x128xf32> to vector<1x128xf32>
    %16 = vector.broadcast %15 : vector<1x128xf32> to vector<16x128xf32>
    %17 = arith.addf %13, %16 : vector<16x128xf32>
    %c0_10 = arith.constant 0 : index
    %c0_11 = arith.constant 0 : index
    %c0_12 = arith.constant 0 : index
    %18 = vector.load %arg4[%c0_10, %c0_11, %c0_12] : memref<1x32x128xbf16, #tpu.memory_space<vmem>>, vector<1x32x128xbf16>
    %19 = vector.shape_cast %18 : vector<1x32x128xbf16> to vector<32x128xbf16>
    %c0_13 = arith.constant 0 : index
    %c0_14 = arith.constant 0 : index
    %c0_15 = arith.constant 0 : index
    %20 = vector.load %arg6[%c0_13, %c0_14, %c0_15] : memref<1x1x32xf32, #tpu.memory_space<vmem>>, vector<1x1x32xf32>
    %21 = vector.shape_cast %20 : vector<1x1x32xf32> to vector<1x32xf32>
    %c0_16 = arith.constant 0 : index
    %c0_17 = arith.constant 0 : index
    %c0_18 = arith.constant 0 : index
    %22 = vector.load %arg7[%c0_16, %c0_17, %c0_18] : memref<1x1x32xf32, #tpu.memory_space<vmem>>, vector<1x1x32xf32>
    %23 = vector.shape_cast %22 : vector<1x1x32xf32> to vector<1x32xf32>
    %c0_19 = arith.constant 0 : index
    %c0_20 = arith.constant 0 : index
    %24 = vector.load %arg11[%c0_19, %c0_20] : memref<2x32xf32, #tpu.memory_space<vmem>>, vector<2x32xf32>
    %c0_21 = arith.constant 0 : index
    %c0_22 = arith.constant 0 : index
    %25 = vector.load %arg12[%c0_21, %c0_22] : memref<2x32xf32, #tpu.memory_space<vmem>>, vector<2x32xf32>
    %26 = vector.extract_strided_slice %17 {offsets = [0, 0], sizes = [2, 128], strides = [1, 1]} : vector<16x128xf32> to vector<2x128xf32>
    %27 = arith.truncf %24 : vector<2x32xf32> to vector<2x32xbf16>
    %cst_23 = arith.constant dense<0.000000e+00> : vector<2x128xf32>
    %28 = tpu.matmul %27, %19, %cst_23 {dimension_numbers = #tpu.dot_dimension_numbers<[1], [0], [0], [1], [0, 0, 1, 1], [], []>} : vector<2x32xbf16>, vector<32x128xbf16>, vector<2x128xf32> -> vector<2x128xf32>
    %29 = arith.addf %26, %28 : vector<2x128xf32>
    %30 = vector.extract_strided_slice %29 {offsets = [0, 0], sizes = [2, 32], strides = [1, 1]} : vector<2x128xf32> to vector<2x32xf32>
    %cst_24 = arith.constant 5.000000e-01 : f32
    %31 = vector.broadcast %cst_24 : f32 to vector<2x32xf32>
    %32 = arith.mulf %31, %30 : vector<2x32xf32>
    %33 = math.tanh %32 : vector<2x32xf32>
    %cst_25 = arith.constant 1.000000e+00 : f32
    %34 = vector.broadcast %cst_25 : f32 to vector<2x32xf32>
    %35 = arith.addf %33, %34 : vector<2x32xf32>
    %cst_26 = arith.constant 5.000000e-01 : f32
    %36 = vector.broadcast %cst_26 : f32 to vector<2x32xf32>
    %37 = arith.mulf %36, %35 : vector<2x32xf32>
    %38 = vector.extract_strided_slice %29 {offsets = [0, 32], sizes = [2, 32], strides = [1, 1]} : vector<2x128xf32> to vector<2x32xf32>
    %cst_27 = arith.constant 5.000000e-01 : f32
    %39 = vector.broadcast %cst_27 : f32 to vector<2x32xf32>
    %40 = arith.mulf %39, %38 : vector<2x32xf32>
    %41 = math.tanh %40 : vector<2x32xf32>
    %cst_28 = arith.constant 1.000000e+00 : f32
    %42 = vector.broadcast %cst_28 : f32 to vector<2x32xf32>
    %43 = arith.addf %41, %42 : vector<2x32xf32>
    %cst_29 = arith.constant 5.000000e-01 : f32
    %44 = vector.broadcast %cst_29 : f32 to vector<2x32xf32>
    %45 = arith.mulf %44, %43 : vector<2x32xf32>
    %46 = vector.extract_strided_slice %29 {offsets = [0, 64], sizes = [2, 32], strides = [1, 1]} : vector<2x128xf32> to vector<2x32xf32>
    %47 = math.tanh %46 : vector<2x32xf32>
    %48 = vector.extract_strided_slice %29 {offsets = [0, 96], sizes = [2, 32], strides = [1, 1]} : vector<2x128xf32> to vector<2x32xf32>
    %cst_30 = arith.constant 5.000000e-01 : f32
    %49 = vector.broadcast %cst_30 : f32 to vector<2x32xf32>
    %50 = arith.mulf %49, %48 : vector<2x32xf32>
    %51 = math.tanh %50 : vector<2x32xf32>
    %cst_31 = arith.constant 1.000000e+00 : f32
    %52 = vector.broadcast %cst_31 : f32 to vector<2x32xf32>
    %53 = arith.addf %51, %52 : vector<2x32xf32>
    %cst_32 = arith.constant 5.000000e-01 : f32
    %54 = vector.broadcast %cst_32 : f32 to vector<2x32xf32>
    %55 = arith.mulf %54, %53 : vector<2x32xf32>
    %56 = arith.mulf %45, %25 : vector<2x32xf32>
    %57 = arith.mulf %37, %47 : vector<2x32xf32>
    %58 = arith.addf %56, %57 : vector<2x32xf32>
    %59 = math.tanh %58 : vector<2x32xf32>
    %60 = arith.mulf %55, %59 : vector<2x32xf32>
    %cst_33 = arith.constant dense<0.000000e+00> : vector<2xf32>
    %61 = vector.multi_reduction <add>, %60, %cst_33 [1] : vector<2x32xf32> to vector<2xf32>
    %62 = vector.shape_cast %61 : vector<2xf32> to vector<2x1xf32>
    %cst_34 = arith.constant 3.200000e+01 : f32
    %63 = vector.broadcast %cst_34 : f32 to vector<2x1xf32>
    %64 = arith.divf %62, %63 : vector<2x1xf32>
    %65 = vector.broadcast %64 : vector<2x1xf32> to vector<2x32xf32>
    %66 = arith.subf %60, %65 : vector<2x32xf32>
    %67 = arith.mulf %66, %66 : vector<2x32xf32>
    %cst_35 = arith.constant dense<0.000000e+00> : vector<2xf32>
    %68 = vector.multi_reduction <add>, %67, %cst_35 [1] : vector<2x32xf32> to vector<2xf32>
    %69 = vector.shape_cast %68 : vector<2xf32> to vector<2x1xf32>
    %cst_36 = arith.constant 3.200000e+01 : f32
    %70 = vector.broadcast %cst_36 : f32 to vector<2x1xf32>
    %71 = arith.divf %69, %70 : vector<2x1xf32>
    %cst_37 = arith.constant 9.99999974E-6 : f32
    %72 = vector.broadcast %cst_37 : f32 to vector<2x1xf32>
    %73 = arith.addf %71, %72 : vector<2x1xf32>
    %74 = math.rsqrt %73 : vector<2x1xf32>
    %75 = vector.broadcast %74 : vector<2x1xf32> to vector<2x32xf32>
    %76 = arith.mulf %66, %75 : vector<2x32xf32>
    %77 = vector.broadcast %21 : vector<1x32xf32> to vector<2x32xf32>
    %78 = arith.mulf %76, %77 : vector<2x32xf32>
    %79 = vector.broadcast %23 : vector<1x32xf32> to vector<2x32xf32>
    %80 = arith.addf %78, %79 : vector<2x32xf32>
    %81 = vector.extract_strided_slice %17 {offsets = [2, 0], sizes = [2, 128], strides = [1, 1]} : vector<16x128xf32> to vector<2x128xf32>
    %82 = arith.truncf %60 : vector<2x32xf32> to vector<2x32xbf16>
    %cst_38 = arith.constant dense<0.000000e+00> : vector<2x128xf32>
    %83 = tpu.matmul %82, %19, %cst_38 {dimension_numbers = #tpu.dot_dimension_numbers<[1], [0], [0], [1], [0, 0, 1, 1], [], []>} : vector<2x32xbf16>, vector<32x128xbf16>, vector<2x128xf32> -> vector<2x128xf32>
    %84 = arith.addf %81, %83 : vector<2x128xf32>
    %85 = vector.extract_strided_slice %84 {offsets = [0, 0], sizes = [2, 32], strides = [1, 1]} : vector<2x128xf32> to vector<2x32xf32>
    %cst_39 = arith.constant 5.000000e-01 : f32
    %86 = vector.broadcast %cst_39 : f32 to vector<2x32xf32>
    %87 = arith.mulf %86, %85 : vector<2x32xf32>
    %88 = math.tanh %87 : vector<2x32xf32>
    %cst_40 = arith.constant 1.000000e+00 : f32
    %89 = vector.broadcast %cst_40 : f32 to vector<2x32xf32>
    %90 = arith.addf %88, %89 : vector<2x32xf32>
    %cst_41 = arith.constant 5.000000e-01 : f32
    %91 = vector.broadcast %cst_41 : f32 to vector<2x32xf32>
    %92 = arith.mulf %91, %90 : vector<2x32xf32>
    %93 = vector.extract_strided_slice %84 {offsets = [0, 32], sizes = [2, 32], strides = [1, 1]} : vector<2x128xf32> to vector<2x32xf32>
    %cst_42 = arith.constant 5.000000e-01 : f32
    %94 = vector.broadcast %cst_42 : f32 to vector<2x32xf32>
    %95 = arith.mulf %94, %93 : vector<2x32xf32>
    %96 = math.tanh %95 : vector<2x32xf32>
    %cst_43 = arith.constant 1.000000e+00 : f32
    %97 = vector.broadcast %cst_43 : f32 to vector<2x32xf32>
    %98 = arith.addf %96, %97 : vector<2x32xf32>
    %cst_44 = arith.constant 5.000000e-01 : f32
    %99 = vector.broadcast %cst_44 : f32 to vector<2x32xf32>
    %100 = arith.mulf %99, %98 : vector<2x32xf32>
    %101 = vector.extract_strided_slice %84 {offsets = [0, 64], sizes = [2, 32], strides = [1, 1]} : vector<2x128xf32> to vector<2x32xf32>
    %102 = math.tanh %101 : vector<2x32xf32>
    %103 = vector.extract_strided_slice %84 {offsets = [0, 96], sizes = [2, 32], strides = [1, 1]} : vector<2x128xf32> to vector<2x32xf32>
    %cst_45 = arith.constant 5.000000e-01 : f32
    %104 = vector.broadcast %cst_45 : f32 to vector<2x32xf32>
    %105 = arith.mulf %104, %103 : vector<2x32xf32>
    %106 = math.tanh %105 : vector<2x32xf32>
    %cst_46 = arith.constant 1.000000e+00 : f32
    %107 = vector.broadcast %cst_46 : f32 to vector<2x32xf32>
    %108 = arith.addf %106, %107 : vector<2x32xf32>
    %cst_47 = arith.constant 5.000000e-01 : f32
    %109 = vector.broadcast %cst_47 : f32 to vector<2x32xf32>
    %110 = arith.mulf %109, %108 : vector<2x32xf32>
    %111 = arith.mulf %100, %58 : vector<2x32xf32>
    %112 = arith.mulf %92, %102 : vector<2x32xf32>
    %113 = arith.addf %111, %112 : vector<2x32xf32>
    %114 = math.tanh %113 : vector<2x32xf32>
    %115 = arith.mulf %110, %114 : vector<2x32xf32>
    %cst_48 = arith.constant dense<0.000000e+00> : vector<2xf32>
    %116 = vector.multi_reduction <add>, %115, %cst_48 [1] : vector<2x32xf32> to vector<2xf32>
    %117 = vector.shape_cast %116 : vector<2xf32> to vector<2x1xf32>
    %cst_49 = arith.constant 3.200000e+01 : f32
    %118 = vector.broadcast %cst_49 : f32 to vector<2x1xf32>
    %119 = arith.divf %117, %118 : vector<2x1xf32>
    %120 = vector.broadcast %119 : vector<2x1xf32> to vector<2x32xf32>
    %121 = arith.subf %115, %120 : vector<2x32xf32>
    %122 = arith.mulf %121, %121 : vector<2x32xf32>
    %cst_50 = arith.constant dense<0.000000e+00> : vector<2xf32>
    %123 = vector.multi_reduction <add>, %122, %cst_50 [1] : vector<2x32xf32> to vector<2xf32>
    %124 = vector.shape_cast %123 : vector<2xf32> to vector<2x1xf32>
    %cst_51 = arith.constant 3.200000e+01 : f32
    %125 = vector.broadcast %cst_51 : f32 to vector<2x1xf32>
    %126 = arith.divf %124, %125 : vector<2x1xf32>
    %cst_52 = arith.constant 9.99999974E-6 : f32
    %127 = vector.broadcast %cst_52 : f32 to vector<2x1xf32>
    %128 = arith.addf %126, %127 : vector<2x1xf32>
    %129 = math.rsqrt %128 : vector<2x1xf32>
    %130 = vector.broadcast %129 : vector<2x1xf32> to vector<2x32xf32>
    %131 = arith.mulf %121, %130 : vector<2x32xf32>
    %132 = vector.broadcast %21 : vector<1x32xf32> to vector<2x32xf32>
    %133 = arith.mulf %131, %132 : vector<2x32xf32>
    %134 = vector.broadcast %23 : vector<1x32xf32> to vector<2x32xf32>
    %135 = arith.addf %133, %134 : vector<2x32xf32>
    %136 = vector.extract_strided_slice %17 {offsets = [4, 0], sizes = [2, 128], strides = [1, 1]} : vector<16x128xf32> to vector<2x128xf32>
    %137 = arith.truncf %115 : vector<2x32xf32> to vector<2x32xbf16>
    %cst_53 = arith.constant dense<0.000000e+00> : vector<2x128xf32>
    %138 = tpu.matmul %137, %19, %cst_53 {dimension_numbers = #tpu.dot_dimension_numbers<[1], [0], [0], [1], [0, 0, 1, 1], [], []>} : vector<2x32xbf16>, vector<32x128xbf16>, vector<2x128xf32> -> vector<2x128xf32>
    %139 = arith.addf %136, %138 : vector<2x128xf32>
    %140 = vector.extract_strided_slice %139 {offsets = [0, 0], sizes = [2, 32], strides = [1, 1]} : vector<2x128xf32> to vector<2x32xf32>
    %cst_54 = arith.constant 5.000000e-01 : f32
    %141 = vector.broadcast %cst_54 : f32 to vector<2x32xf32>
    %142 = arith.mulf %141, %140 : vector<2x32xf32>
    %143 = math.tanh %142 : vector<2x32xf32>
    %cst_55 = arith.constant 1.000000e+00 : f32
    %144 = vector.broadcast %cst_55 : f32 to vector<2x32xf32>
    %145 = arith.addf %143, %144 : vector<2x32xf32>
    %cst_56 = arith.constant 5.000000e-01 : f32
    %146 = vector.broadcast %cst_56 : f32 to vector<2x32xf32>
    %147 = arith.mulf %146, %145 : vector<2x32xf32>
    %148 = vector.extract_strided_slice %139 {offsets = [0, 32], sizes = [2, 32], strides = [1, 1]} : vector<2x128xf32> to vector<2x32xf32>
    %cst_57 = arith.constant 5.000000e-01 : f32
    %149 = vector.broadcast %cst_57 : f32 to vector<2x32xf32>
    %150 = arith.mulf %149, %148 : vector<2x32xf32>
    %151 = math.tanh %150 : vector<2x32xf32>
    %cst_58 = arith.constant 1.000000e+00 : f32
    %152 = vector.broadcast %cst_58 : f32 to vector<2x32xf32>
    %153 = arith.addf %151, %152 : vector<2x32xf32>
    %cst_59 = arith.constant 5.000000e-01 : f32
    %154 = vector.broadcast %cst_59 : f32 to vector<2x32xf32>
    %155 = arith.mulf %154, %153 : vector<2x32xf32>
    %156 = vector.extract_strided_slice %139 {offsets = [0, 64], sizes = [2, 32], strides = [1, 1]} : vector<2x128xf32> to vector<2x32xf32>
    %157 = math.tanh %156 : vector<2x32xf32>
    %158 = vector.extract_strided_slice %139 {offsets = [0, 96], sizes = [2, 32], strides = [1, 1]} : vector<2x128xf32> to vector<2x32xf32>
    %cst_60 = arith.constant 5.000000e-01 : f32
    %159 = vector.broadcast %cst_60 : f32 to vector<2x32xf32>
    %160 = arith.mulf %159, %158 : vector<2x32xf32>
    %161 = math.tanh %160 : vector<2x32xf32>
    %cst_61 = arith.constant 1.000000e+00 : f32
    %162 = vector.broadcast %cst_61 : f32 to vector<2x32xf32>
    %163 = arith.addf %161, %162 : vector<2x32xf32>
    %cst_62 = arith.constant 5.000000e-01 : f32
    %164 = vector.broadcast %cst_62 : f32 to vector<2x32xf32>
    %165 = arith.mulf %164, %163 : vector<2x32xf32>
    %166 = arith.mulf %155, %113 : vector<2x32xf32>
    %167 = arith.mulf %147, %157 : vector<2x32xf32>
    %168 = arith.addf %166, %167 : vector<2x32xf32>
    %169 = math.tanh %168 : vector<2x32xf32>
    %170 = arith.mulf %165, %169 : vector<2x32xf32>
    %cst_63 = arith.constant dense<0.000000e+00> : vector<2xf32>
    %171 = vector.multi_reduction <add>, %170, %cst_63 [1] : vector<2x32xf32> to vector<2xf32>
    %172 = vector.shape_cast %171 : vector<2xf32> to vector<2x1xf32>
    %cst_64 = arith.constant 3.200000e+01 : f32
    %173 = vector.broadcast %cst_64 : f32 to vector<2x1xf32>
    %174 = arith.divf %172, %173 : vector<2x1xf32>
    %175 = vector.broadcast %174 : vector<2x1xf32> to vector<2x32xf32>
    %176 = arith.subf %170, %175 : vector<2x32xf32>
    %177 = arith.mulf %176, %176 : vector<2x32xf32>
    %cst_65 = arith.constant dense<0.000000e+00> : vector<2xf32>
    %178 = vector.multi_reduction <add>, %177, %cst_65 [1] : vector<2x32xf32> to vector<2xf32>
    %179 = vector.shape_cast %178 : vector<2xf32> to vector<2x1xf32>
    %cst_66 = arith.constant 3.200000e+01 : f32
    %180 = vector.broadcast %cst_66 : f32 to vector<2x1xf32>
    %181 = arith.divf %179, %180 : vector<2x1xf32>
    %cst_67 = arith.constant 9.99999974E-6 : f32
    %182 = vector.broadcast %cst_67 : f32 to vector<2x1xf32>
    %183 = arith.addf %181, %182 : vector<2x1xf32>
    %184 = math.rsqrt %183 : vector<2x1xf32>
    %185 = vector.broadcast %184 : vector<2x1xf32> to vector<2x32xf32>
    %186 = arith.mulf %176, %185 : vector<2x32xf32>
    %187 = vector.broadcast %21 : vector<1x32xf32> to vector<2x32xf32>
    %188 = arith.mulf %186, %187 : vector<2x32xf32>
    %189 = vector.broadcast %23 : vector<1x32xf32> to vector<2x32xf32>
    %190 = arith.addf %188, %189 : vector<2x32xf32>
    %191 = vector.extract_strided_slice %17 {offsets = [6, 0], sizes = [2, 128], strides = [1, 1]} : vector<16x128xf32> to vector<2x128xf32>
    %192 = arith.truncf %170 : vector<2x32xf32> to vector<2x32xbf16>
    %cst_68 = arith.constant dense<0.000000e+00> : vector<2x128xf32>
    %193 = tpu.matmul %192, %19, %cst_68 {dimension_numbers = #tpu.dot_dimension_numbers<[1], [0], [0], [1], [0, 0, 1, 1], [], []>} : vector<2x32xbf16>, vector<32x128xbf16>, vector<2x128xf32> -> vector<2x128xf32>
    %194 = arith.addf %191, %193 : vector<2x128xf32>
    %195 = vector.extract_strided_slice %194 {offsets = [0, 0], sizes = [2, 32], strides = [1, 1]} : vector<2x128xf32> to vector<2x32xf32>
    %cst_69 = arith.constant 5.000000e-01 : f32
    %196 = vector.broadcast %cst_69 : f32 to vector<2x32xf32>
    %197 = arith.mulf %196, %195 : vector<2x32xf32>
    %198 = math.tanh %197 : vector<2x32xf32>
    %cst_70 = arith.constant 1.000000e+00 : f32
    %199 = vector.broadcast %cst_70 : f32 to vector<2x32xf32>
    %200 = arith.addf %198, %199 : vector<2x32xf32>
    %cst_71 = arith.constant 5.000000e-01 : f32
    %201 = vector.broadcast %cst_71 : f32 to vector<2x32xf32>
    %202 = arith.mulf %201, %200 : vector<2x32xf32>
    %203 = vector.extract_strided_slice %194 {offsets = [0, 32], sizes = [2, 32], strides = [1, 1]} : vector<2x128xf32> to vector<2x32xf32>
    %cst_72 = arith.constant 5.000000e-01 : f32
    %204 = vector.broadcast %cst_72 : f32 to vector<2x32xf32>
    %205 = arith.mulf %204, %203 : vector<2x32xf32>
    %206 = math.tanh %205 : vector<2x32xf32>
    %cst_73 = arith.constant 1.000000e+00 : f32
    %207 = vector.broadcast %cst_73 : f32 to vector<2x32xf32>
    %208 = arith.addf %206, %207 : vector<2x32xf32>
    %cst_74 = arith.constant 5.000000e-01 : f32
    %209 = vector.broadcast %cst_74 : f32 to vector<2x32xf32>
    %210 = arith.mulf %209, %208 : vector<2x32xf32>
    %211 = vector.extract_strided_slice %194 {offsets = [0, 64], sizes = [2, 32], strides = [1, 1]} : vector<2x128xf32> to vector<2x32xf32>
    %212 = math.tanh %211 : vector<2x32xf32>
    %213 = vector.extract_strided_slice %194 {offsets = [0, 96], sizes = [2, 32], strides = [1, 1]} : vector<2x128xf32> to vector<2x32xf32>
    %cst_75 = arith.constant 5.000000e-01 : f32
    %214 = vector.broadcast %cst_75 : f32 to vector<2x32xf32>
    %215 = arith.mulf %214, %213 : vector<2x32xf32>
    %216 = math.tanh %215 : vector<2x32xf32>
    %cst_76 = arith.constant 1.000000e+00 : f32
    %217 = vector.broadcast %cst_76 : f32 to vector<2x32xf32>
    %218 = arith.addf %216, %217 : vector<2x32xf32>
    %cst_77 = arith.constant 5.000000e-01 : f32
    %219 = vector.broadcast %cst_77 : f32 to vector<2x32xf32>
    %220 = arith.mulf %219, %218 : vector<2x32xf32>
    %221 = arith.mulf %210, %168 : vector<2x32xf32>
    %222 = arith.mulf %202, %212 : vector<2x32xf32>
    %223 = arith.addf %221, %222 : vector<2x32xf32>
    %224 = math.tanh %223 : vector<2x32xf32>
    %225 = arith.mulf %220, %224 : vector<2x32xf32>
    %cst_78 = arith.constant dense<0.000000e+00> : vector<2xf32>
    %226 = vector.multi_reduction <add>, %225, %cst_78 [1] : vector<2x32xf32> to vector<2xf32>
    %227 = vector.shape_cast %226 : vector<2xf32> to vector<2x1xf32>
    %cst_79 = arith.constant 3.200000e+01 : f32
    %228 = vector.broadcast %cst_79 : f32 to vector<2x1xf32>
    %229 = arith.divf %227, %228 : vector<2x1xf32>
    %230 = vector.broadcast %229 : vector<2x1xf32> to vector<2x32xf32>
    %231 = arith.subf %225, %230 : vector<2x32xf32>
    %232 = arith.mulf %231, %231 : vector<2x32xf32>
    %cst_80 = arith.constant dense<0.000000e+00> : vector<2xf32>
    %233 = vector.multi_reduction <add>, %232, %cst_80 [1] : vector<2x32xf32> to vector<2xf32>
    %234 = vector.shape_cast %233 : vector<2xf32> to vector<2x1xf32>
    %cst_81 = arith.constant 3.200000e+01 : f32
    %235 = vector.broadcast %cst_81 : f32 to vector<2x1xf32>
    %236 = arith.divf %234, %235 : vector<2x1xf32>
    %cst_82 = arith.constant 9.99999974E-6 : f32
    %237 = vector.broadcast %cst_82 : f32 to vector<2x1xf32>
    %238 = arith.addf %236, %237 : vector<2x1xf32>
    %239 = math.rsqrt %238 : vector<2x1xf32>
    %240 = vector.broadcast %239 : vector<2x1xf32> to vector<2x32xf32>
    %241 = arith.mulf %231, %240 : vector<2x32xf32>
    %242 = vector.broadcast %21 : vector<1x32xf32> to vector<2x32xf32>
    %243 = arith.mulf %241, %242 : vector<2x32xf32>
    %244 = vector.broadcast %23 : vector<1x32xf32> to vector<2x32xf32>
    %245 = arith.addf %243, %244 : vector<2x32xf32>
    %246 = vector.extract_strided_slice %17 {offsets = [8, 0], sizes = [2, 128], strides = [1, 1]} : vector<16x128xf32> to vector<2x128xf32>
    %247 = arith.truncf %225 : vector<2x32xf32> to vector<2x32xbf16>
    %cst_83 = arith.constant dense<0.000000e+00> : vector<2x128xf32>
    %248 = tpu.matmul %247, %19, %cst_83 {dimension_numbers = #tpu.dot_dimension_numbers<[1], [0], [0], [1], [0, 0, 1, 1], [], []>} : vector<2x32xbf16>, vector<32x128xbf16>, vector<2x128xf32> -> vector<2x128xf32>
    %249 = arith.addf %246, %248 : vector<2x128xf32>
    %250 = vector.extract_strided_slice %249 {offsets = [0, 0], sizes = [2, 32], strides = [1, 1]} : vector<2x128xf32> to vector<2x32xf32>
    %cst_84 = arith.constant 5.000000e-01 : f32
    %251 = vector.broadcast %cst_84 : f32 to vector<2x32xf32>
    %252 = arith.mulf %251, %250 : vector<2x32xf32>
    %253 = math.tanh %252 : vector<2x32xf32>
    %cst_85 = arith.constant 1.000000e+00 : f32
    %254 = vector.broadcast %cst_85 : f32 to vector<2x32xf32>
    %255 = arith.addf %253, %254 : vector<2x32xf32>
    %cst_86 = arith.constant 5.000000e-01 : f32
    %256 = vector.broadcast %cst_86 : f32 to vector<2x32xf32>
    %257 = arith.mulf %256, %255 : vector<2x32xf32>
    %258 = vector.extract_strided_slice %249 {offsets = [0, 32], sizes = [2, 32], strides = [1, 1]} : vector<2x128xf32> to vector<2x32xf32>
    %cst_87 = arith.constant 5.000000e-01 : f32
    %259 = vector.broadcast %cst_87 : f32 to vector<2x32xf32>
    %260 = arith.mulf %259, %258 : vector<2x32xf32>
    %261 = math.tanh %260 : vector<2x32xf32>
    %cst_88 = arith.constant 1.000000e+00 : f32
    %262 = vector.broadcast %cst_88 : f32 to vector<2x32xf32>
    %263 = arith.addf %261, %262 : vector<2x32xf32>
    %cst_89 = arith.constant 5.000000e-01 : f32
    %264 = vector.broadcast %cst_89 : f32 to vector<2x32xf32>
    %265 = arith.mulf %264, %263 : vector<2x32xf32>
    %266 = vector.extract_strided_slice %249 {offsets = [0, 64], sizes = [2, 32], strides = [1, 1]} : vector<2x128xf32> to vector<2x32xf32>
    %267 = math.tanh %266 : vector<2x32xf32>
    %268 = vector.extract_strided_slice %249 {offsets = [0, 96], sizes = [2, 32], strides = [1, 1]} : vector<2x128xf32> to vector<2x32xf32>
    %cst_90 = arith.constant 5.000000e-01 : f32
    %269 = vector.broadcast %cst_90 : f32 to vector<2x32xf32>
    %270 = arith.mulf %269, %268 : vector<2x32xf32>
    %271 = math.tanh %270 : vector<2x32xf32>
    %cst_91 = arith.constant 1.000000e+00 : f32
    %272 = vector.broadcast %cst_91 : f32 to vector<2x32xf32>
    %273 = arith.addf %271, %272 : vector<2x32xf32>
    %cst_92 = arith.constant 5.000000e-01 : f32
    %274 = vector.broadcast %cst_92 : f32 to vector<2x32xf32>
    %275 = arith.mulf %274, %273 : vector<2x32xf32>
    %276 = arith.mulf %265, %223 : vector<2x32xf32>
    %277 = arith.mulf %257, %267 : vector<2x32xf32>
    %278 = arith.addf %276, %277 : vector<2x32xf32>
    %279 = math.tanh %278 : vector<2x32xf32>
    %280 = arith.mulf %275, %279 : vector<2x32xf32>
    %cst_93 = arith.constant dense<0.000000e+00> : vector<2xf32>
    %281 = vector.multi_reduction <add>, %280, %cst_93 [1] : vector<2x32xf32> to vector<2xf32>
    %282 = vector.shape_cast %281 : vector<2xf32> to vector<2x1xf32>
    %cst_94 = arith.constant 3.200000e+01 : f32
    %283 = vector.broadcast %cst_94 : f32 to vector<2x1xf32>
    %284 = arith.divf %282, %283 : vector<2x1xf32>
    %285 = vector.broadcast %284 : vector<2x1xf32> to vector<2x32xf32>
    %286 = arith.subf %280, %285 : vector<2x32xf32>
    %287 = arith.mulf %286, %286 : vector<2x32xf32>
    %cst_95 = arith.constant dense<0.000000e+00> : vector<2xf32>
    %288 = vector.multi_reduction <add>, %287, %cst_95 [1] : vector<2x32xf32> to vector<2xf32>
    %289 = vector.shape_cast %288 : vector<2xf32> to vector<2x1xf32>
    %cst_96 = arith.constant 3.200000e+01 : f32
    %290 = vector.broadcast %cst_96 : f32 to vector<2x1xf32>
    %291 = arith.divf %289, %290 : vector<2x1xf32>
    %cst_97 = arith.constant 9.99999974E-6 : f32
    %292 = vector.broadcast %cst_97 : f32 to vector<2x1xf32>
    %293 = arith.addf %291, %292 : vector<2x1xf32>
    %294 = math.rsqrt %293 : vector<2x1xf32>
    %295 = vector.broadcast %294 : vector<2x1xf32> to vector<2x32xf32>
    %296 = arith.mulf %286, %295 : vector<2x32xf32>
    %297 = vector.broadcast %21 : vector<1x32xf32> to vector<2x32xf32>
    %298 = arith.mulf %296, %297 : vector<2x32xf32>
    %299 = vector.broadcast %23 : vector<1x32xf32> to vector<2x32xf32>
    %300 = arith.addf %298, %299 : vector<2x32xf32>
    %301 = vector.extract_strided_slice %17 {offsets = [10, 0], sizes = [2, 128], strides = [1, 1]} : vector<16x128xf32> to vector<2x128xf32>
    %302 = arith.truncf %280 : vector<2x32xf32> to vector<2x32xbf16>
    %cst_98 = arith.constant dense<0.000000e+00> : vector<2x128xf32>
    %303 = tpu.matmul %302, %19, %cst_98 {dimension_numbers = #tpu.dot_dimension_numbers<[1], [0], [0], [1], [0, 0, 1, 1], [], []>} : vector<2x32xbf16>, vector<32x128xbf16>, vector<2x128xf32> -> vector<2x128xf32>
    %304 = arith.addf %301, %303 : vector<2x128xf32>
    %305 = vector.extract_strided_slice %304 {offsets = [0, 0], sizes = [2, 32], strides = [1, 1]} : vector<2x128xf32> to vector<2x32xf32>
    %cst_99 = arith.constant 5.000000e-01 : f32
    %306 = vector.broadcast %cst_99 : f32 to vector<2x32xf32>
    %307 = arith.mulf %306, %305 : vector<2x32xf32>
    %308 = math.tanh %307 : vector<2x32xf32>
    %cst_100 = arith.constant 1.000000e+00 : f32
    %309 = vector.broadcast %cst_100 : f32 to vector<2x32xf32>
    %310 = arith.addf %308, %309 : vector<2x32xf32>
    %cst_101 = arith.constant 5.000000e-01 : f32
    %311 = vector.broadcast %cst_101 : f32 to vector<2x32xf32>
    %312 = arith.mulf %311, %310 : vector<2x32xf32>
    %313 = vector.extract_strided_slice %304 {offsets = [0, 32], sizes = [2, 32], strides = [1, 1]} : vector<2x128xf32> to vector<2x32xf32>
    %cst_102 = arith.constant 5.000000e-01 : f32
    %314 = vector.broadcast %cst_102 : f32 to vector<2x32xf32>
    %315 = arith.mulf %314, %313 : vector<2x32xf32>
    %316 = math.tanh %315 : vector<2x32xf32>
    %cst_103 = arith.constant 1.000000e+00 : f32
    %317 = vector.broadcast %cst_103 : f32 to vector<2x32xf32>
    %318 = arith.addf %316, %317 : vector<2x32xf32>
    %cst_104 = arith.constant 5.000000e-01 : f32
    %319 = vector.broadcast %cst_104 : f32 to vector<2x32xf32>
    %320 = arith.mulf %319, %318 : vector<2x32xf32>
    %321 = vector.extract_strided_slice %304 {offsets = [0, 64], sizes = [2, 32], strides = [1, 1]} : vector<2x128xf32> to vector<2x32xf32>
    %322 = math.tanh %321 : vector<2x32xf32>
    %323 = vector.extract_strided_slice %304 {offsets = [0, 96], sizes = [2, 32], strides = [1, 1]} : vector<2x128xf32> to vector<2x32xf32>
    %cst_105 = arith.constant 5.000000e-01 : f32
    %324 = vector.broadcast %cst_105 : f32 to vector<2x32xf32>
    %325 = arith.mulf %324, %323 : vector<2x32xf32>
    %326 = math.tanh %325 : vector<2x32xf32>
    %cst_106 = arith.constant 1.000000e+00 : f32
    %327 = vector.broadcast %cst_106 : f32 to vector<2x32xf32>
    %328 = arith.addf %326, %327 : vector<2x32xf32>
    %cst_107 = arith.constant 5.000000e-01 : f32
    %329 = vector.broadcast %cst_107 : f32 to vector<2x32xf32>
    %330 = arith.mulf %329, %328 : vector<2x32xf32>
    %331 = arith.mulf %320, %278 : vector<2x32xf32>
    %332 = arith.mulf %312, %322 : vector<2x32xf32>
    %333 = arith.addf %331, %332 : vector<2x32xf32>
    %334 = math.tanh %333 : vector<2x32xf32>
    %335 = arith.mulf %330, %334 : vector<2x32xf32>
    %cst_108 = arith.constant dense<0.000000e+00> : vector<2xf32>
    %336 = vector.multi_reduction <add>, %335, %cst_108 [1] : vector<2x32xf32> to vector<2xf32>
    %337 = vector.shape_cast %336 : vector<2xf32> to vector<2x1xf32>
    %cst_109 = arith.constant 3.200000e+01 : f32
    %338 = vector.broadcast %cst_109 : f32 to vector<2x1xf32>
    %339 = arith.divf %337, %338 : vector<2x1xf32>
    %340 = vector.broadcast %339 : vector<2x1xf32> to vector<2x32xf32>
    %341 = arith.subf %335, %340 : vector<2x32xf32>
    %342 = arith.mulf %341, %341 : vector<2x32xf32>
    %cst_110 = arith.constant dense<0.000000e+00> : vector<2xf32>
    %343 = vector.multi_reduction <add>, %342, %cst_110 [1] : vector<2x32xf32> to vector<2xf32>
    %344 = vector.shape_cast %343 : vector<2xf32> to vector<2x1xf32>
    %cst_111 = arith.constant 3.200000e+01 : f32
    %345 = vector.broadcast %cst_111 : f32 to vector<2x1xf32>
    %346 = arith.divf %344, %345 : vector<2x1xf32>
    %cst_112 = arith.constant 9.99999974E-6 : f32
    %347 = vector.broadcast %cst_112 : f32 to vector<2x1xf32>
    %348 = arith.addf %346, %347 : vector<2x1xf32>
    %349 = math.rsqrt %348 : vector<2x1xf32>
    %350 = vector.broadcast %349 : vector<2x1xf32> to vector<2x32xf32>
    %351 = arith.mulf %341, %350 : vector<2x32xf32>
    %352 = vector.broadcast %21 : vector<1x32xf32> to vector<2x32xf32>
    %353 = arith.mulf %351, %352 : vector<2x32xf32>
    %354 = vector.broadcast %23 : vector<1x32xf32> to vector<2x32xf32>
    %355 = arith.addf %353, %354 : vector<2x32xf32>
    %356 = vector.extract_strided_slice %17 {offsets = [12, 0], sizes = [2, 128], strides = [1, 1]} : vector<16x128xf32> to vector<2x128xf32>
    %357 = arith.truncf %335 : vector<2x32xf32> to vector<2x32xbf16>
    %cst_113 = arith.constant dense<0.000000e+00> : vector<2x128xf32>
    %358 = tpu.matmul %357, %19, %cst_113 {dimension_numbers = #tpu.dot_dimension_numbers<[1], [0], [0], [1], [0, 0, 1, 1], [], []>} : vector<2x32xbf16>, vector<32x128xbf16>, vector<2x128xf32> -> vector<2x128xf32>
    %359 = arith.addf %356, %358 : vector<2x128xf32>
    %360 = vector.extract_strided_slice %359 {offsets = [0, 0], sizes = [2, 32], strides = [1, 1]} : vector<2x128xf32> to vector<2x32xf32>
    %cst_114 = arith.constant 5.000000e-01 : f32
    %361 = vector.broadcast %cst_114 : f32 to vector<2x32xf32>
    %362 = arith.mulf %361, %360 : vector<2x32xf32>
    %363 = math.tanh %362 : vector<2x32xf32>
    %cst_115 = arith.constant 1.000000e+00 : f32
    %364 = vector.broadcast %cst_115 : f32 to vector<2x32xf32>
    %365 = arith.addf %363, %364 : vector<2x32xf32>
    %cst_116 = arith.constant 5.000000e-01 : f32
    %366 = vector.broadcast %cst_116 : f32 to vector<2x32xf32>
    %367 = arith.mulf %366, %365 : vector<2x32xf32>
    %368 = vector.extract_strided_slice %359 {offsets = [0, 32], sizes = [2, 32], strides = [1, 1]} : vector<2x128xf32> to vector<2x32xf32>
    %cst_117 = arith.constant 5.000000e-01 : f32
    %369 = vector.broadcast %cst_117 : f32 to vector<2x32xf32>
    %370 = arith.mulf %369, %368 : vector<2x32xf32>
    %371 = math.tanh %370 : vector<2x32xf32>
    %cst_118 = arith.constant 1.000000e+00 : f32
    %372 = vector.broadcast %cst_118 : f32 to vector<2x32xf32>
    %373 = arith.addf %371, %372 : vector<2x32xf32>
    %cst_119 = arith.constant 5.000000e-01 : f32
    %374 = vector.broadcast %cst_119 : f32 to vector<2x32xf32>
    %375 = arith.mulf %374, %373 : vector<2x32xf32>
    %376 = vector.extract_strided_slice %359 {offsets = [0, 64], sizes = [2, 32], strides = [1, 1]} : vector<2x128xf32> to vector<2x32xf32>
    %377 = math.tanh %376 : vector<2x32xf32>
    %378 = vector.extract_strided_slice %359 {offsets = [0, 96], sizes = [2, 32], strides = [1, 1]} : vector<2x128xf32> to vector<2x32xf32>
    %cst_120 = arith.constant 5.000000e-01 : f32
    %379 = vector.broadcast %cst_120 : f32 to vector<2x32xf32>
    %380 = arith.mulf %379, %378 : vector<2x32xf32>
    %381 = math.tanh %380 : vector<2x32xf32>
    %cst_121 = arith.constant 1.000000e+00 : f32
    %382 = vector.broadcast %cst_121 : f32 to vector<2x32xf32>
    %383 = arith.addf %381, %382 : vector<2x32xf32>
    %cst_122 = arith.constant 5.000000e-01 : f32
    %384 = vector.broadcast %cst_122 : f32 to vector<2x32xf32>
    %385 = arith.mulf %384, %383 : vector<2x32xf32>
    %386 = arith.mulf %375, %333 : vector<2x32xf32>
    %387 = arith.mulf %367, %377 : vector<2x32xf32>
    %388 = arith.addf %386, %387 : vector<2x32xf32>
    %389 = math.tanh %388 : vector<2x32xf32>
    %390 = arith.mulf %385, %389 : vector<2x32xf32>
    %cst_123 = arith.constant dense<0.000000e+00> : vector<2xf32>
    %391 = vector.multi_reduction <add>, %390, %cst_123 [1] : vector<2x32xf32> to vector<2xf32>
    %392 = vector.shape_cast %391 : vector<2xf32> to vector<2x1xf32>
    %cst_124 = arith.constant 3.200000e+01 : f32
    %393 = vector.broadcast %cst_124 : f32 to vector<2x1xf32>
    %394 = arith.divf %392, %393 : vector<2x1xf32>
    %395 = vector.broadcast %394 : vector<2x1xf32> to vector<2x32xf32>
    %396 = arith.subf %390, %395 : vector<2x32xf32>
    %397 = arith.mulf %396, %396 : vector<2x32xf32>
    %cst_125 = arith.constant dense<0.000000e+00> : vector<2xf32>
    %398 = vector.multi_reduction <add>, %397, %cst_125 [1] : vector<2x32xf32> to vector<2xf32>
    %399 = vector.shape_cast %398 : vector<2xf32> to vector<2x1xf32>
    %cst_126 = arith.constant 3.200000e+01 : f32
    %400 = vector.broadcast %cst_126 : f32 to vector<2x1xf32>
    %401 = arith.divf %399, %400 : vector<2x1xf32>
    %cst_127 = arith.constant 9.99999974E-6 : f32
    %402 = vector.broadcast %cst_127 : f32 to vector<2x1xf32>
    %403 = arith.addf %401, %402 : vector<2x1xf32>
    %404 = math.rsqrt %403 : vector<2x1xf32>
    %405 = vector.broadcast %404 : vector<2x1xf32> to vector<2x32xf32>
    %406 = arith.mulf %396, %405 : vector<2x32xf32>
    %407 = vector.broadcast %21 : vector<1x32xf32> to vector<2x32xf32>
    %408 = arith.mulf %406, %407 : vector<2x32xf32>
    %409 = vector.broadcast %23 : vector<1x32xf32> to vector<2x32xf32>
    %410 = arith.addf %408, %409 : vector<2x32xf32>
    %411 = vector.extract_strided_slice %17 {offsets = [14, 0], sizes = [2, 128], strides = [1, 1]} : vector<16x128xf32> to vector<2x128xf32>
    %412 = arith.truncf %390 : vector<2x32xf32> to vector<2x32xbf16>
    %cst_128 = arith.constant dense<0.000000e+00> : vector<2x128xf32>
    %413 = tpu.matmul %412, %19, %cst_128 {dimension_numbers = #tpu.dot_dimension_numbers<[1], [0], [0], [1], [0, 0, 1, 1], [], []>} : vector<2x32xbf16>, vector<32x128xbf16>, vector<2x128xf32> -> vector<2x128xf32>
    %414 = arith.addf %411, %413 : vector<2x128xf32>
    %415 = vector.extract_strided_slice %414 {offsets = [0, 0], sizes = [2, 32], strides = [1, 1]} : vector<2x128xf32> to vector<2x32xf32>
    %cst_129 = arith.constant 5.000000e-01 : f32
    %416 = vector.broadcast %cst_129 : f32 to vector<2x32xf32>
    %417 = arith.mulf %416, %415 : vector<2x32xf32>
    %418 = math.tanh %417 : vector<2x32xf32>
    %cst_130 = arith.constant 1.000000e+00 : f32
    %419 = vector.broadcast %cst_130 : f32 to vector<2x32xf32>
    %420 = arith.addf %418, %419 : vector<2x32xf32>
    %cst_131 = arith.constant 5.000000e-01 : f32
    %421 = vector.broadcast %cst_131 : f32 to vector<2x32xf32>
    %422 = arith.mulf %421, %420 : vector<2x32xf32>
    %423 = vector.extract_strided_slice %414 {offsets = [0, 32], sizes = [2, 32], strides = [1, 1]} : vector<2x128xf32> to vector<2x32xf32>
    %cst_132 = arith.constant 5.000000e-01 : f32
    %424 = vector.broadcast %cst_132 : f32 to vector<2x32xf32>
    %425 = arith.mulf %424, %423 : vector<2x32xf32>
    %426 = math.tanh %425 : vector<2x32xf32>
    %cst_133 = arith.constant 1.000000e+00 : f32
    %427 = vector.broadcast %cst_133 : f32 to vector<2x32xf32>
    %428 = arith.addf %426, %427 : vector<2x32xf32>
    %cst_134 = arith.constant 5.000000e-01 : f32
    %429 = vector.broadcast %cst_134 : f32 to vector<2x32xf32>
    %430 = arith.mulf %429, %428 : vector<2x32xf32>
    %431 = vector.extract_strided_slice %414 {offsets = [0, 64], sizes = [2, 32], strides = [1, 1]} : vector<2x128xf32> to vector<2x32xf32>
    %432 = math.tanh %431 : vector<2x32xf32>
    %433 = vector.extract_strided_slice %414 {offsets = [0, 96], sizes = [2, 32], strides = [1, 1]} : vector<2x128xf32> to vector<2x32xf32>
    %cst_135 = arith.constant 5.000000e-01 : f32
    %434 = vector.broadcast %cst_135 : f32 to vector<2x32xf32>
    %435 = arith.mulf %434, %433 : vector<2x32xf32>
    %436 = math.tanh %435 : vector<2x32xf32>
    %cst_136 = arith.constant 1.000000e+00 : f32
    %437 = vector.broadcast %cst_136 : f32 to vector<2x32xf32>
    %438 = arith.addf %436, %437 : vector<2x32xf32>
    %cst_137 = arith.constant 5.000000e-01 : f32
    %439 = vector.broadcast %cst_137 : f32 to vector<2x32xf32>
    %440 = arith.mulf %439, %438 : vector<2x32xf32>
    %441 = arith.mulf %430, %388 : vector<2x32xf32>
    %442 = arith.mulf %422, %432 : vector<2x32xf32>
    %443 = arith.addf %441, %442 : vector<2x32xf32>
    %444 = math.tanh %443 : vector<2x32xf32>
    %445 = arith.mulf %440, %444 : vector<2x32xf32>
    %cst_138 = arith.constant dense<0.000000e+00> : vector<2xf32>
    %446 = vector.multi_reduction <add>, %445, %cst_138 [1] : vector<2x32xf32> to vector<2xf32>
    %447 = vector.shape_cast %446 : vector<2xf32> to vector<2x1xf32>
    %cst_139 = arith.constant 3.200000e+01 : f32
    %448 = vector.broadcast %cst_139 : f32 to vector<2x1xf32>
    %449 = arith.divf %447, %448 : vector<2x1xf32>
    %450 = vector.broadcast %449 : vector<2x1xf32> to vector<2x32xf32>
    %451 = arith.subf %445, %450 : vector<2x32xf32>
    %452 = arith.mulf %451, %451 : vector<2x32xf32>
    %cst_140 = arith.constant dense<0.000000e+00> : vector<2xf32>
    %453 = vector.multi_reduction <add>, %452, %cst_140 [1] : vector<2x32xf32> to vector<2xf32>
    %454 = vector.shape_cast %453 : vector<2xf32> to vector<2x1xf32>
    %cst_141 = arith.constant 3.200000e+01 : f32
    %455 = vector.broadcast %cst_141 : f32 to vector<2x1xf32>
    %456 = arith.divf %454, %455 : vector<2x1xf32>
    %cst_142 = arith.constant 9.99999974E-6 : f32
    %457 = vector.broadcast %cst_142 : f32 to vector<2x1xf32>
    %458 = arith.addf %456, %457 : vector<2x1xf32>
    %459 = math.rsqrt %458 : vector<2x1xf32>
    %460 = vector.broadcast %459 : vector<2x1xf32> to vector<2x32xf32>
    %461 = arith.mulf %451, %460 : vector<2x32xf32>
    %462 = vector.broadcast %21 : vector<1x32xf32> to vector<2x32xf32>
    %463 = arith.mulf %461, %462 : vector<2x32xf32>
    %464 = vector.broadcast %23 : vector<1x32xf32> to vector<2x32xf32>
    %465 = arith.addf %463, %464 : vector<2x32xf32>
    %c0_143 = arith.constant 0 : index
    %c0_144 = arith.constant 0 : index
    %466 = vector.load %arg11[%c0_143, %c0_144] : memref<2x32xf32, #tpu.memory_space<vmem>>, vector<2x32xf32>
    tpu.vector_store %arg11[%c0_143, %c0_144], %445 {strides = array<i32>} : memref<2x32xf32, #tpu.memory_space<vmem>>, vector<2x32xf32>,
    %c0_145 = arith.constant 0 : index
    %c0_146 = arith.constant 0 : index
    %467 = vector.load %arg12[%c0_145, %c0_146] : memref<2x32xf32, #tpu.memory_space<vmem>>, vector<2x32xf32>
    tpu.vector_store %arg12[%c0_145, %c0_146], %443 {strides = array<i32>} : memref<2x32xf32, #tpu.memory_space<vmem>>, vector<2x32xf32>,
    %468 = tpu.concatenate %80, %135, %190, %245, %300, %355, %410, %465 in 0 : vector<2x32xf32>, vector<2x32xf32>, vector<2x32xf32>, vector<2x32xf32>, vector<2x32xf32>, vector<2x32xf32>, vector<2x32xf32>, vector<2x32xf32> -> vector<16x32xf32>
    %469 = arith.index_cast %4 : i32 to index
    %c0_147 = arith.constant 0 : index
    %470 = vector.load %arg13[%469, %c0_147] : memref<16x32xf32, #tpu.memory_space<vmem>>, vector<16x32xf32>
    tpu.vector_store %arg13[%469, %c0_147], %468 {strides = array<i32>} : memref<16x32xf32, #tpu.memory_space<vmem>>, vector<16x32xf32>,
    %c0_148 = arith.constant 0 : index
    %c0_149 = arith.constant 0 : index
    %471 = vector.load %arg8[%c0_148, %c0_149] : memref<16x32xf32, #tpu.memory_space<vmem>>, vector<16x32xf32>
    tpu.vector_store %arg8[%c0_148, %c0_149], %468 {strides = array<i32>} : memref<16x32xf32, #tpu.memory_space<vmem>>, vector<16x32xf32>,
    %c0_i32_150 = arith.constant 0 : i32
    %472 = arith.cmpi eq, %arg1, %c0_i32_150 : i32
    %473 = arith.extui %472 : i1 to i32
    %c0_i32_151 = arith.constant 0 : i32
    %474 = arith.cmpi ne, %473, %c0_i32_151 : i32
    scf.if %474 {
      %c0_152 = arith.constant 0 : index
      %c0_153 = arith.constant 0 : index
      %c0_154 = arith.constant 0 : index
      %475 = vector.load %arg9[%c0_152, %c0_153, %c0_154] : memref<1x2x32xf32, #tpu.memory_space<vmem>>, vector<1x2x32xf32>
      %476 = vector.shape_cast %475 : vector<1x2x32xf32> to vector<2x32xf32>
      %477 = vector.shape_cast %445 : vector<2x32xf32> to vector<1x2x32xf32>
      tpu.vector_store %arg9[%c0_152, %c0_153, %c0_154], %477 {strides = array<i32>} : memref<1x2x32xf32, #tpu.memory_space<vmem>>, vector<1x2x32xf32>,
      %c0_155 = arith.constant 0 : index
      %c0_156 = arith.constant 0 : index
      %c0_157 = arith.constant 0 : index
      %478 = vector.load %arg10[%c0_155, %c0_156, %c0_157] : memref<1x2x32xf32, #tpu.memory_space<vmem>>, vector<1x2x32xf32>
      %479 = vector.shape_cast %478 : vector<1x2x32xf32> to vector<2x32xf32>
      %480 = vector.shape_cast %443 : vector<2x32xf32> to vector<1x2x32xf32>
      tpu.vector_store %arg10[%c0_155, %c0_156, %c0_157], %480 {strides = array<i32>} : memref<1x2x32xf32, #tpu.memory_space<vmem>>, vector<1x2x32xf32>,
    } else {
    }
    return
  }
  func.func @transform_0(%arg0: i32, %arg1: i32) -> (i32, i32) {
    %c0_i32 = arith.constant 0 : i32
    %c0_i32_0 = arith.constant 0 : i32
    return %arg1, %c0_i32 : i32, i32
  }
  func.func @transform_1(%arg0: i32, %arg1: i32) -> (i32, i32, i32) {
    %c0_i32 = arith.constant 0 : i32
    %c0_i32_0 = arith.constant 0 : i32
    %c0_i32_1 = arith.constant 0 : i32
    return %arg0, %c0_i32, %c0_i32_0 : i32, i32, i32
  }
  func.func @transform_2(%arg0: i32, %arg1: i32) -> (i32, i32, i32) {
    %c0_i32 = arith.constant 0 : i32
    %c0_i32_0 = arith.constant 0 : i32
    %c0_i32_1 = arith.constant 0 : i32
    return %arg0, %c0_i32, %c0_i32_0 : i32, i32, i32
  }
  func.func @transform_3(%arg0: i32, %arg1: i32) -> (i32, i32, i32) {
    %c0_i32 = arith.constant 0 : i32
    %c0_i32_0 = arith.constant 0 : i32
    %c0_i32_1 = arith.constant 0 : i32
    return %arg0, %c0_i32, %c0_i32_0 : i32, i32, i32
  }
  func.func @transform_4(%arg0: i32, %arg1: i32) -> (i32, i32, i32) {
    %c0_i32 = arith.constant 0 : i32
    %c0_i32_0 = arith.constant 0 : i32
    %c0_i32_1 = arith.constant 0 : i32
    return %arg0, %c0_i32, %c0_i32_0 : i32, i32, i32
  }
  func.func @transform_5(%arg0: i32, %arg1: i32) -> (i32, i32, i32) {
    %c0_i32 = arith.constant 0 : i32
    %c0_i32_0 = arith.constant 0 : i32
    %c0_i32_1 = arith.constant 0 : i32
    return %arg0, %c0_i32, %c0_i32_0 : i32, i32, i32
  }
  func.func @transform_6(%arg0: i32, %arg1: i32) -> (i32, i32) {
    %c0_i32 = arith.constant 0 : i32
    %c0_i32_0 = arith.constant 0 : i32
    return %arg1, %c0_i32 : i32, i32
  }
  func.func @transform_7(%arg0: i32, %arg1: i32) -> (i32, i32, i32) {
    %c0_i32 = arith.constant 0 : i32
    %c0_i32_0 = arith.constant 0 : i32
    %c0_i32_1 = arith.constant 0 : i32
    return %arg0, %c0_i32, %c0_i32_0 : i32, i32, i32
  }
  func.func @transform_8(%arg0: i32, %arg1: i32) -> (i32, i32, i32) {
    %c0_i32 = arith.constant 0 : i32
    %c0_i32_0 = arith.constant 0 : i32
    %c0_i32_1 = arith.constant 0 : i32
    return %arg0, %c0_i32, %c0_i32_0 : i32, i32, i32
  }
}

</mosaic_0001>

<llo_original>
// kernel: tpu_custom_call.1
$region0: #{tpu_custom_call.1}
  #allocation0 [shape = 'u32[]', space=smem, size = 0x4, offset = 0x4, fixed_abs, tag = 'smem constant byte address 0x4 - core index']
  #allocation1 [shape = 'u32[144,128]{1,0:T(1,128)}', space=vmem, size = 0x12000, scoped, tag = 'internal scratch']
  #allocation2 [shape = 'f32[2,32]{1,0:T(2,128)}', space=vmem, size = 0x400, scoped, tag = 'scratch operand']
  #allocation3 [shape = 'f32[2,32]{1,0:T(2,128)}', space=vmem, size = 0x400, scoped, tag = 'scratch operand']
  #allocation4 [shape = 'f32[16,32]{1,0:T(8,128)}', space=vmem, size = 0x2000, scoped, tag = 'scratch operand']
  %s0 = inlined_call_operand.hbm [shape: f32[16,32], index: 0, kind: input, shape index: {}]
  %s1 = inlined_call_operand.hbm [shape: bf16[2,32,128], index: 1, kind: input, shape index: {}]
  %s2 = inlined_call_operand.hbm [shape: bf16[2,32,128], index: 2, kind: input, shape index: {}]
  %s3 = inlined_call_operand.vmem [shape: f32[2,1,128], index: 3, kind: input, shape index: {}]
  %s4 = inlined_call_operand.vmem [shape: f32[2,1,32], index: 4, kind: input, shape index: {}]
  %s5 = inlined_call_operand.vmem [shape: f32[2,1,32], index: 5, kind: input, shape index: {}]
  %s6 = inlined_call_operand.hbm [shape: f32[16,32], index: 6, kind: output, shape index: {0}]
  %s7 = inlined_call_operand.hbm [shape: f32[2,2,32], index: 7, kind: output, shape index: {1}]
  %s8 = inlined_call_operand.hbm [shape: f32[2,2,32], index: 8, kind: output, shape index: {2}]
  %9 = xla_tuple %s6, %s7, %s8
  %s10 = sld [smem:[#allocation0]]
  $region93: #{tpu_custom_call.1} parent=0
    _
  %s12 = ssub.s32 1, %s10
  %s13 = scalar_select 0, %s12, %s10
  $region1: #{tpu_custom_call.1} parent=0
    #allocation5 [shape = 'u8[8192]{0}', space=vmem, size = 0x2000, scoped, tag = 'input window, operand 0, single buffered']
    #allocation6 [shape = 's32[2]{0}', space=sflag, size = 0x8, scoped, tag = 'scoped memory for tpu_custom_call.1']
    #allocation7 [shape = 's32[2]{0}', space=sflag, size = 0x8, scoped, tag = 'scoped memory for tpu_custom_call.1']
    #allocation8 [shape = 'u8[16384]{0}', space=vmem, size = 0x4000, scoped, tag = 'input window, operand 1']
    #allocation9 [shape = 's32[2]{0}', space=sflag, size = 0x8, scoped, tag = 'scoped memory for tpu_custom_call.1']
    #allocation10 [shape = 'u8[16384]{0}', space=vmem, size = 0x4000, scoped, tag = 'input window, operand 2']
    #allocation11 [shape = 'u8[8192]{0}', space=vmem, size = 0x2000, scoped, tag = 'output window, operand 0, single buffered']
    #allocation12 [shape = 'u8[2048]{0}', space=vmem, size = 0x800, scoped, tag = 'output window, operand 1']
    #allocation13 [shape = 's32[2]{0}', space=sflag, size = 0x8, scoped, tag = 'scoped memory for tpu_custom_call.1']
    #allocation14 [shape = 'u8[2048]{0}', space=vmem, size = 0x800, scoped, tag = 'output window, operand 2']
    %14 = vsyncpa [#allocation6], 0
    %15 = vsyncpa [#allocation9], 0
    %s16 = scalar_lea.sflag [#allocation9], 1
    %17 = vsyncpa %s16, 0
    %18 = vsyncpa [#allocation7], 0
    %19 = vsyncpa [#allocation13], 0
    %s20 = scalar_lea.sflag [#allocation13], 1
    %21 = vsyncpa %s20, 0
    loop: start=0, step=1, limit=4
    $region2: #{tpu_custom_call.1} parent=1 // loop_pre_header
      _
    $region3: #{tpu_custom_call.1} parent=1 // loop_header
      %s23 = sphi 0, %s27
      %p24 = scmp.ge.s32.totalorder %s23, 4
      %s30 = sphi 0, %s42
      %s31 = sphi 0, %s38
      %s32 = sphi 0, %s30
      %s33 = sphi 0, %s31
      %s34 = sphi 0, %s32
      %s35 = sphi 0, %s33
      %s45 = sphi 0, %s47
      %s48 = sphi 0, %s45
      %s49 = sphi 0, %s48
      %s65 = sphi 0, %s49
      %s71 = sphi 0, %s73
      %s74 = sphi 0, %s71
      %s75 = sphi 0, %s74
      %s91 = sphi 0, %s75
      %s97 = sphi 0, %s99
      %s100 = sphi 0, %s97
      %s101 = sphi 0, %s100
      %s117 = sphi 0, %s101
      %s123 = sphi 0, %s125
      %s126 = sphi 0, %s123
      %s127 = sphi 0, %s126
      %s143 = sphi 0, %s127
      %s149 = sphi 0, %s151
      %s152 = sphi 0, %s149
      %s153 = sphi 0, %s152
      %s169 = sphi 0, %s153
      %s175 = sphi 0, %s177
      %s178 = sphi 0, %s175
      %s179 = sphi 0, %s178
      %s195 = sphi 0, %s179
      %s201 = sphi 0, %s203
      %s204 = sphi 0, %s201
      %s205 = sphi 0, %s204
      %s221 = sphi 0, %s205
      %s227 = sphi 0, %s229
      %s230 = sphi 0, %s227
      %s231 = sphi 0, %s230
      %s247 = sphi 0, %s231
      %s253 = sphi 0, %s255
      %s256 = sphi 0, %s253
      %s257 = sphi 0, %s256
      %s273 = sphi 0, %s257
    $region4: #{tpu_custom_call.1} parent=1 // loop_header_branch
      %26 = sbr.rel (%p24) target = $region8
    $region5: #{tpu_custom_call.1} parent=1 // loop_body
      %s28 = ssub.s32 %s23, 1
      %s29 = ssub.s32 %s23, 2
      %s36 = sadd.s32 1, %s31
      %p37 = scmp.ge.s32.totalorder %s36, 1
      %s38 = scalar_select %p37, 0, %s36
      %s39 = sadd.s32 1, %s30
      %s40 = scalar_select %p37, %s39, %s30
      %p41 = scmp.ge.s32.totalorder %s40, 2
      %s42 = scalar_select %p41, 0, %s40
      %s43 = ssub.s32 %s31, %s38
      %p44 = scmp.eq.s32.totalorder %s43, 0
      %s46 = sadd.s32 %s45, 1
      %s47 = scalar_select %p44, %s45, %s46
      %p50 = pneg %p44
      %p51 = scmp.eq.s32.totalorder %s23, 1
      %p52 = por %p50, %p51
      %p53 = scmp.ne.s32.totalorder %s45, %s48
      %p54 = scmp.eq.s32.totalorder %s23, 0
      %p55 = por %p53, %p54
      %p56 = scmp.ne.s32.totalorder %s45, %s48
      %p57 = scmp.eq.s32.totalorder %s28, 1
      %p58 = por %p56, %p57
      %p59 = scmp.ne.s32.totalorder %s48, %s49
      %p60 = scmp.eq.s32.totalorder %s28, 0
      %p61 = por %p59, %p60
      %p62 = scmp.ne.s32.totalorder %s48, %s49
      %p63 = scmp.eq.s32.totalorder %s29, 1
      %p64 = por %p62, %p63
      %p66 = scmp.ne.s32.totalorder %s49, %s65
      %p67 = scmp.eq.s32.totalorder %s29, 0
      %p68 = por %p66, %p67
      %s69 = ssub.s32 %s30, %s42
      %p70 = scmp.eq.s32.totalorder %s69, 0
      %s72 = sadd.s32 %s71, 1
      %s73 = scalar_select %p70, %s71, %s72
      %p76 = pneg %p70
      %p77 = scmp.eq.s32.totalorder %s23, 1
      %p78 = por %p76, %p77
      %p79 = scmp.ne.s32.totalorder %s71, %s74
      %p80 = scmp.eq.s32.totalorder %s23, 0
      %p81 = por %p79, %p80
      %p82 = scmp.ne.s32.totalorder %s71, %s74
      %p83 = scmp.eq.s32.totalorder %s28, 1
      %p84 = por %p82, %p83
      %p85 = scmp.ne.s32.totalorder %s74, %s75
      %p86 = scmp.eq.s32.totalorder %s28, 0
      %p87 = por %p85, %p86
      %p88 = scmp.ne.s32.totalorder %s74, %s75
      %p89 = scmp.eq.s32.totalorder %s29, 1
      %p90 = por %p88, %p89
      %p92 = scmp.ne.s32.totalorder %s75, %s91
      %p93 = scmp.eq.s32.totalorder %s29, 0
      %p94 = por %p92, %p93
      %s95 = ssub.s32 %s30, %s42
      %p96 = scmp.eq.s32.totalorder %s95, 0
      %s98 = sadd.s32 %s97, 1
      %s99 = scalar_select %p96, %s97, %s98
      %p102 = pneg %p96
      %p103 = scmp.eq.s32.totalorder %s23, 1
      %p104 = por %p102, %p103
      %p105 = scmp.ne.s32.totalorder %s97, %s100
      %p106 = scmp.eq.s32.totalorder %s23, 0
      %p107 = por %p105, %p106
      %p108 = scmp.ne.s32.totalorder %s97, %s100
      %p109 = scmp.eq.s32.totalorder %s28, 1
      %p110 = por %p108, %p109
      %p111 = scmp.ne.s32.totalorder %s100, %s101
      %p112 = scmp.eq.s32.totalorder %s28, 0
      %p113 = por %p111, %p112
      %p114 = scmp.ne.s32.totalorder %s100, %s101
      %p115 = scmp.eq.s32.totalorder %s29, 1
      %p116 = por %p114, %p115
      %p118 = scmp.ne.s32.totalorder %s101, %s117
      %p119 = scmp.eq.s32.totalorder %s29, 0
      %p120 = por %p118, %p119
      %s121 = ssub.s32 %s30, %s42
      %p122 = scmp.eq.s32.totalorder %s121, 0
      %s124 = sadd.s32 %s123, 1
      %s125 = scalar_select %p122, %s123, %s124
      %p128 = pneg %p122
      %p129 = scmp.eq.s32.totalorder %s23, 1
      %p130 = por %p128, %p129
      %p131 = scmp.ne.s32.totalorder %s123, %s126
      %p132 = scmp.eq.s32.totalorder %s23, 0
      %p133 = por %p131, %p132
      %p134 = scmp.ne.s32.totalorder %s123, %s126
      %p135 = scmp.eq.s32.totalorder %s28, 1
      %p136 = por %p134, %p135
      %p137 = scmp.ne.s32.totalorder %s126, %s127
      %p138 = scmp.eq.s32.totalorder %s28, 0
      %p139 = por %p137, %p138
      %p140 = scmp.ne.s32.totalorder %s126, %s127
      %p141 = scmp.eq.s32.totalorder %s29, 1
      %p142 = por %p140, %p141
      %p144 = scmp.ne.s32.totalorder %s127, %s143
      %p145 = scmp.eq.s32.totalorder %s29, 0
      %p146 = por %p144, %p145
      %s147 = ssub.s32 %s30, %s42
      %p148 = scmp.eq.s32.totalorder %s147, 0
      %s150 = sadd.s32 %s149, 1
      %s151 = scalar_select %p148, %s149, %s150
      %p154 = pneg %p148
      %p155 = scmp.eq.s32.totalorder %s23, 1
      %p156 = por %p154, %p155
      %p157 = scmp.ne.s32.totalorder %s149, %s152
      %p158 = scmp.eq.s32.totalorder %s23, 0
      %p159 = por %p157, %p158
      %p160 = scmp.ne.s32.totalorder %s149, %s152
      %p161 = scmp.eq.s32.totalorder %s28, 1
      %p162 = por %p160, %p161
      %p163 = scmp.ne.s32.totalorder %s152, %s153
      %p164 = scmp.eq.s32.totalorder %s28, 0
      %p165 = por %p163, %p164
      %p166 = scmp.ne.s32.totalorder %s152, %s153
      %p167 = scmp.eq.s32.totalorder %s29, 1
      %p168 = por %p166, %p167
      %p170 = scmp.ne.s32.totalorder %s153, %s169
      %p171 = scmp.eq.s32.totalorder %s29, 0
      %p172 = por %p170, %p171
      %s173 = ssub.s32 %s30, %s42
      %p174 = scmp.eq.s32.totalorder %s173, 0
      %s176 = sadd.s32 %s175, 1
      %s177 = scalar_select %p174, %s175, %s176
      %p180 = pneg %p174
      %p181 = scmp.eq.s32.totalorder %s23, 1
      %p182 = por %p180, %p181
      %p183 = scmp.ne.s32.totalorder %s175, %s178
      %p184 = scmp.eq.s32.totalorder %s23, 0
      %p185 = por %p183, %p184
      %p186 = scmp.ne.s32.totalorder %s175, %s178
      %p187 = scmp.eq.s32.totalorder %s28, 1
      %p188 = por %p186, %p187
      %p189 = scmp.ne.s32.totalorder %s178, %s179
      %p190 = scmp.eq.s32.totalorder %s28, 0
      %p191 = por %p189, %p190
      %p192 = scmp.ne.s32.totalorder %s178, %s179
      %p193 = scmp.eq.s32.totalorder %s29, 1
      %p194 = por %p192, %p193
      %p196 = scmp.ne.s32.totalorder %s179, %s195
      %p197 = scmp.eq.s32.totalorder %s29, 0
      %p198 = por %p196, %p197
      %s199 = ssub.s32 %s31, %s38
      %p200 = scmp.eq.s32.totalorder %s199, 0
      %s202 = sadd.s32 %s201, 1
      %s203 = scalar_select %p200, %s201, %s202
      %p206 = pneg %p200
      %p207 = scmp.eq.s32.totalorder %s23, 1
      %p208 = por %p206, %p207
      %p209 = scmp.ne.s32.totalorder %s201, %s204
      %p210 = scmp.eq.s32.totalorder %s23, 0
      %p211 = por %p209, %p210
      %p212 = scmp.ne.s32.totalorder %s201, %s204
      %p213 = scmp.eq.s32.totalorder %s28, 1
      %p214 = por %p212, %p213
      %p215 = scmp.ne.s32.totalorder %s204, %s205
      %p216 = scmp.eq.s32.totalorder %s28, 0
      %p217 = por %p215, %p216
      %p218 = scmp.ne.s32.totalorder %s204, %s205
      %p219 = scmp.eq.s32.totalorder %s29, 1
      %p220 = por %p218, %p219
      %p222 = scmp.ne.s32.totalorder %s205, %s221
      %p223 = scmp.eq.s32.totalorder %s29, 0
      %p224 = por %p222, %p223
      %s225 = ssub.s32 %s30, %s42
      %p226 = scmp.eq.s32.totalorder %s225, 0
      %s228 = sadd.s32 %s227, 1
      %s229 = scalar_select %p226, %s227, %s228
      %p232 = pneg %p226
      %p233 = scmp.eq.s32.totalorder %s23, 1
      %p234 = por %p232, %p233
      %p235 = scmp.ne.s32.totalorder %s227, %s230
      %p236 = scmp.eq.s32.totalorder %s23, 0
      %p237 = por %p235, %p236
      %p238 = scmp.ne.s32.totalorder %s227, %s230
      %p239 = scmp.eq.s32.totalorder %s28, 1
      %p240 = por %p238, %p239
      %p241 = scmp.ne.s32.totalorder %s230, %s231
      %p242 = scmp.eq.s32.totalorder %s28, 0
      %p243 = por %p241, %p242
      %p244 = scmp.ne.s32.totalorder %s230, %s231
      %p245 = scmp.eq.s32.totalorder %s29, 1
      %p246 = por %p244, %p245
      %p248 = scmp.ne.s32.totalorder %s231, %s247
      %p249 = scmp.eq.s32.totalorder %s29, 0
      %p250 = por %p248, %p249
      %s251 = ssub.s32 %s30, %s42
      %p252 = scmp.eq.s32.totalorder %s251, 0
      %s254 = sadd.s32 %s253, 1
      %s255 = scalar_select %p252, %s253, %s254
      %p258 = pneg %p252
      %p259 = scmp.eq.s32.totalorder %s23, 1
      %p260 = por %p258, %p259
      %p261 = scmp.ne.s32.totalorder %s253, %s256
      %p262 = scmp.eq.s32.totalorder %s23, 0
      %p263 = por %p261, %p262
      %p264 = scmp.ne.s32.totalorder %s253, %s256
      %p265 = scmp.eq.s32.totalorder %s28, 1
      %p266 = por %p264, %p265
      %p267 = scmp.ne.s32.totalorder %s256, %s257
      %p268 = scmp.eq.s32.totalorder %s28, 0
      %p269 = por %p267, %p268
      %p270 = scmp.ne.s32.totalorder %s256, %s257
      %p271 = scmp.eq.s32.totalorder %s29, 1
      %p272 = por %p270, %p271
      %p274 = scmp.ne.s32.totalorder %s257, %s273
      %p275 = scmp.eq.s32.totalorder %s29, 0
      %p276 = por %p274, %p275
      %p277 = scmp.le.s32.totalorder 1, %s23
      %p278 = scmp.lt.s32.totalorder %s23, 3
      %p279 = pnand %p277, %p278
      %p280 = pneg %p279
      // Predicated region
      $region9: #{tpu_custom_call.1} parent=5 // pred_check
        _
      $region10: #{tpu_custom_call.1} parent=5 // pred_check_branch
        %282 = sbr.rel (%p279) target = $region12
      $region11: #{tpu_custom_call.1} parent=5 // pred_region
        %s283 = ssub.s32 %s23, 1
        // Predicated region
        $region13: #{tpu_custom_call.1} parent=11 // pred_check
          %p284 = pneg %p61
        $region14: #{tpu_custom_call.1} parent=11 // pred_check_branch
          %286 = sbr.rel (%p284) target = $region16
        $region15: #{tpu_custom_call.1} parent=11 // pred_region
          %s287 = smul.u32 2, %s33
          %s289 = ssub.s32 256, 256
          %290 = vsyncadd [#allocation6], %s289
          %s291 = smul.addr %s287, 128
          %s292 = scalar_lea.hbm %s0, %s291
          %s293 = sshll.u32 [#allocation5], 4
          %s294 = int_to_ptr.vmem [resolvable:$true] %s293
          %299 = dma.hbm_to_vmem [thread:$0]  %s292, 256, %s294, [#allocation6], 128, 128, 8
        $region16: #{tpu_custom_call.1} parent=11 // pred_fallthru
          _
      $region12: #{tpu_custom_call.1} parent=5 // pred_fallthru
        _
      %p300 = scmp.lt.s32.totalorder %s23, 2
      // Predicated region
      $region17: #{tpu_custom_call.1} parent=5 // pred_check
        %p301 = pneg %p300
      $region18: #{tpu_custom_call.1} parent=5 // pred_check_branch
        %303 = sbr.rel (%p301) target = $region20
      $region19: #{tpu_custom_call.1} parent=5 // pred_region
        // Predicated region
        $region21: #{tpu_custom_call.1} parent=19 // pred_check
          %p304 = pneg %p81
        $region22: #{tpu_custom_call.1} parent=19 // pred_check_branch
          %306 = sbr.rel (%p304) target = $region24
        $region23: #{tpu_custom_call.1} parent=19 // pred_region
          %s307 = sand.u32 %s23, 1
          %s308 = scalar_lea.sflag [#allocation9], %s307
          %s309 = sand.u32 %s71, 1
          %s310 = smul.addr %s309, 16
          %s311 = scalar_lea.vmem [#allocation8], %s310
          %s313 = ssub.s32 256, 256
          %314 = vsyncadd %s308, %s313
          %s315 = smul.addr %s30, 4
          %s316 = smul.addr %s315, 64
          %s317 = scalar_lea.hbm %s1, %s316
          %s318 = sshll.u32 %s311, 4
          %s319 = int_to_ptr.vmem [resolvable:$true] %s318
          %324 = dma.hbm_to_vmem [thread:$0]  %s317, 256, %s319, %s308, 64, 64, 4
        $region24: #{tpu_custom_call.1} parent=19 // pred_fallthru
          _
        // Predicated region
        $region25: #{tpu_custom_call.1} parent=19 // pred_check
          %p325 = pneg %p107
        $region26: #{tpu_custom_call.1} parent=19 // pred_check_branch
          %327 = sbr.rel (%p325) target = $region28
        $region27: #{tpu_custom_call.1} parent=19 // pred_region
          %s328 = sand.u32 %s23, 1
          %s329 = scalar_lea.sflag [#allocation9], %s328
          %s330 = sand.u32 %s97, 1
          %s331 = smul.addr %s330, 16
          %s332 = scalar_lea.vmem [#allocation10], %s331
          %s334 = ssub.s32 256, 256
          %335 = vsyncadd %s329, %s334
          %s336 = smul.addr %s30, 4
          %s337 = smul.addr %s336, 64
          %s338 = scalar_lea.hbm %s2, %s337
          %s339 = sshll.u32 %s332, 4
          %s340 = int_to_ptr.vmem [resolvable:$true] %s339
          %345 = dma.hbm_to_vmem [thread:$0]  %s338, 256, %s340, %s329, 64, 64, 4
        $region28: #{tpu_custom_call.1} parent=19 // pred_fallthru
          _
        // Predicated region
        $region29: #{tpu_custom_call.1} parent=19 // pred_check
          %p346 = pneg %p133
        $region30: #{tpu_custom_call.1} parent=19 // pred_check_branch
          %348 = sbr.rel (%p346) target = $region32
        $region31: #{tpu_custom_call.1} parent=19 // pred_region
          %p349 = scmp.lt.s32.totalorder %s30, 1
          %s350 = scalar_select %p349, %s30, 1
          %s351 = scalar_lea.vmem %s3, %s350
        $region32: #{tpu_custom_call.1} parent=19 // pred_fallthru
          _
        // Predicated region
        $region33: #{tpu_custom_call.1} parent=19 // pred_check
          %p352 = pneg %p159
        $region34: #{tpu_custom_call.1} parent=19 // pred_check_branch
          %354 = sbr.rel (%p352) target = $region36
        $region35: #{tpu_custom_call.1} parent=19 // pred_region
          %p355 = scmp.lt.s32.totalorder %s30, 1
          %s356 = scalar_select %p355, %s30, 1
          %s357 = scalar_lea.vmem %s4, %s356
        $region36: #{tpu_custom_call.1} parent=19 // pred_fallthru
          _
        // Predicated region
        $region37: #{tpu_custom_call.1} parent=19 // pred_check
          %p358 = pneg %p185
        $region38: #{tpu_custom_call.1} parent=19 // pred_check_branch
          %360 = sbr.rel (%p358) target = $region40
        $region39: #{tpu_custom_call.1} parent=19 // pred_region
          %p361 = scmp.lt.s32.totalorder %s30, 1
          %s362 = scalar_select %p361, %s30, 1
          %s363 = scalar_lea.vmem %s5, %s362
        $region40: #{tpu_custom_call.1} parent=19 // pred_fallthru
          _
      $region20: #{tpu_custom_call.1} parent=5 // pred_fallthru
        _
      %p364 = scmp.le.s32.totalorder 1, %s23
      %p365 = scmp.lt.s32.totalorder %s23, 3
      %p366 = pnand %p364, %p365
      %p367 = pneg %p366
      // Predicated region
      $region41: #{tpu_custom_call.1} parent=5 // pred_check
        _
      $region42: #{tpu_custom_call.1} parent=5 // pred_check_branch
        %369 = sbr.rel (%p366) target = $region44
      $region43: #{tpu_custom_call.1} parent=5 // pred_region
        %s370 = ssub.s32 %s23, 1
        // Predicated region
        $region45: #{tpu_custom_call.1} parent=43 // pred_check
          %p371 = pneg %p61
        $region46: #{tpu_custom_call.1} parent=43 // pred_check_branch
          %373 = sbr.rel (%p371) target = $region48
        $region47: #{tpu_custom_call.1} parent=43 // pred_region
          %374 = dma.done [#allocation6], 256
        $region48: #{tpu_custom_call.1} parent=43 // pred_fallthru
          _
        %s375 = sand.u32 %s28, 1
        %s376 = scalar_lea.sflag [#allocation9], %s375
        %s377 = sand.u32 %s74, 1
        %s378 = smul.addr %s377, 16
        %s379 = scalar_lea.vmem [#allocation8], %s378
        // Predicated region
        $region49: #{tpu_custom_call.1} parent=43 // pred_check
          %p380 = pneg %p87
        $region50: #{tpu_custom_call.1} parent=43 // pred_check_branch
          %382 = sbr.rel (%p380) target = $region52
        $region51: #{tpu_custom_call.1} parent=43 // pred_region
          %383 = dma.done %s376, 256
        $region52: #{tpu_custom_call.1} parent=43 // pred_fallthru
          _
        %s384 = sand.u32 %s28, 1
        %s385 = scalar_lea.sflag [#allocation9], %s384
        %s386 = sand.u32 %s100, 1
        %s387 = smul.addr %s386, 16
        %s388 = scalar_lea.vmem [#allocation10], %s387
        // Predicated region
        $region53: #{tpu_custom_call.1} parent=43 // pred_check
          %p389 = pneg %p113
        $region54: #{tpu_custom_call.1} parent=43 // pred_check_branch
          %391 = sbr.rel (%p389) target = $region56
        $region55: #{tpu_custom_call.1} parent=43 // pred_region
          %392 = dma.done %s385, 256
        $region56: #{tpu_custom_call.1} parent=43 // pred_fallthru
          _
        %p393 = pneg %p61
        %p394 = pneg %p58
        %s395 = sand.u32 %s28, 1
        %s396 = scalar_lea.sflag [#allocation9], %s395
        %s397 = sand.u32 %s74, 1
        %s398 = smul.addr %s397, 16
        %s399 = scalar_lea.vmem [#allocation8], %s398
        %p400 = pneg %p87
        %p401 = pneg %p84
        %s402 = sand.u32 %s28, 1
        %s403 = scalar_lea.sflag [#allocation9], %s402
        %s404 = sand.u32 %s100, 1
        %s405 = smul.addr %s404, 16
        %s406 = scalar_lea.vmem [#allocation10], %s405
        %p407 = pneg %p113
        %p408 = pneg %p110
        %p409 = scmp.lt.s32.totalorder %s32, 1
        %s410 = scalar_select %p409, %s32, 1
        %s411 = scalar_lea.vmem %s3, %s410
        %p412 = pneg %p139
        %p413 = pneg %p136
        %p414 = scmp.lt.s32.totalorder %s32, 1
        %s415 = scalar_select %p414, %s32, 1
        %s416 = scalar_lea.vmem %s4, %s415
        %p417 = pneg %p165
        %p418 = pneg %p162
        %p419 = scmp.lt.s32.totalorder %s32, 1
        %s420 = scalar_select %p419, %s32, 1
        %s421 = scalar_lea.vmem %s5, %s420
        %p422 = pneg %p191
        %p423 = pneg %p188
        %p424 = pneg %p217
        %p425 = pneg %p214
        %p426 = pneg %p243
        %p427 = pneg %p240
        %s428 = sand.u32 %s28, 1
        %s429 = scalar_lea.sflag [#allocation13], %s428
        %s430 = sand.u32 %s230, 1
        %s431 = smul.addr %s430, 2
        %s432 = scalar_lea.vmem [#allocation12], %s431
        %p433 = pneg %p269
        %p434 = pneg %p266
        %s435 = sand.u32 %s28, 1
        %s436 = scalar_lea.sflag [#allocation13], %s435
        %s437 = sand.u32 %s256, 1
        %s438 = smul.addr %s437, 2
        %s439 = scalar_lea.vmem [#allocation14], %s438
        %s440 = smul.u32 2, %s33
        %p441 = scmp.lt.s32.totalorder %s32, 1
        %s442 = scalar_select %p441, %s32, 1
        %s443 = scalar_lea.vmem %s3, %s442
        %p444 = scmp.lt.s32.totalorder %s32, 1
        %s445 = scalar_select %p444, %s32, 1
        %s446 = scalar_lea.vmem %s4, %s445
        %p447 = scmp.lt.s32.totalorder %s32, 1
        %s448 = scalar_select %p447, %s32, 1
        %s449 = scalar_lea.vmem %s5, %s448
        %s450 = smul.u32 2, %s33
        %p452 = scmp.eq.s32.totalorder %s33, 0
        // Predicated region
        $region57: #{tpu_custom_call.1} parent=43 // pred_check
          %p453 = pneg %p452
        $region58: #{tpu_custom_call.1} parent=43 // pred_check_branch
          %455 = sbr.rel (%p453) target = $region60
        $region59: #{tpu_custom_call.1} parent=43 // pred_region
          %vm456 = vcmask 254976
          %457 = vst.msk [vmem:[#allocation2] sm:$0x3] %vm456, 0.0
          %458 = vst.msk [vmem:[#allocation3] sm:$0x3] %vm456, 0.0
        $region60: #{tpu_custom_call.1} parent=43 // pred_fallthru
          _
        %s459 = smul.u32 %s33, 16
        %p460 = scmp.eq.s32.totalorder %s32, 0
        %v461 = vld [vmem:[#allocation5] sm:$0xff]
        %v462 = vld [vmem:[#allocation5 + $0x8] sm:$0xff]
        %s463 = scalar_lea.vmem [#allocation4], %s459
        %v464 = vld [vmem:[%s463] sm:$0xff]
        %v465 = vld [vmem:[%s463 + $0x8] sm:$0xff]
        %s466 = scalar_select %p460, 1, 0
        %v467 = vstv %s466
        %vm468 = vcmp.eq.s32.totalorder %v467, 1
        %v469 = vsel %vm468, %v461, %v464
        %v470 = vsel %vm468, %v462, %v465
        %v471 = vpack.c.bf16 %v470, %v469
        %v472 = vld [vmem:[%s379] sm:$0xf]
        %v473 = vld [vmem:[%s379 + $0x4] sm:$0xf]
        %v474 = vld [vmem:[%s379 + $0x8] sm:$0xf]
        %v475 = vld [vmem:[%s379 + $0xc] sm:$0xf]
        %v476 = vld [vmem:[%s443] sm:$0x1]
        %v478 = vlaneseq
        %v479 = vshrl.u32 %v478, 7
        %v480 = vsub.s32 0, %v479
        %v481 = vrot.slane %v476, %v480
        %v487 = vunpack.c.l.b16 %v472
        %v488 = vunpack.c.l.b16 %v473
        %v489 = vunpack.c.l.b16 %v474
        %v490 = vunpack.c.l.b16 %v475
        %v491 = vpack.c.b16 %v488, %v487
        %v492 = vpack.c.b16 %v490, %v489
        %vm495 = vcmask 261120
        %v497 = vsel %vm495, %v471, 0
        %499 = vmatprep.subr.bf16.mxu0 0
        %500 = vmatpush1.bf16.msra.mxu0 %v491
        %501 = vmatprep.subr.bf16.mxu0 0
        %502 = vmatpush1.bf16.msra.mxu0 %v492
        %503 = vmatprep.subr.bf16.mxu0 0
        %504 = vmatpush1.bf16.msra.mxu0 0
        %505 = vmatprep.subr.bf16.mxu0 0
        %506 = vmatpush1.bf16.msra.mxu0 0
        %507 = vmatprep.subr.bf16.mxu0 0
        %508 = vmatpush1.bf16.msra.mxu0 0
        %509 = vmatprep.subr.bf16.mxu0 0
        %510 = vmatpush1.bf16.msra.mxu0 0
        %511 = vmatprep.subr.bf16.mxu0 0
        %512 = vmatpush1.bf16.msra.mxu0 0
        %513 = vmatprep.subr.bf16.mxu0 0
        %514 = vmatpush1.bf16.msra.mxu0 0
        %515 = vmatprep.subr.bf16.mxu0 0
        %516 = vmatpush1.bf16.msra.mxu0 0
        %517 = vmatprep.subr.bf16.mxu0 0
        %518 = vmatpush1.bf16.msra.mxu0 0
        %519 = vmatprep.subr.bf16.mxu0 0
        %520 = vmatpush1.bf16.msra.mxu0 0
        %521 = vmatprep.subr.bf16.mxu0 0
        %522 = vmatpush1.bf16.msra.mxu0 0
        %523 = vmatprep.subr.bf16.mxu0 0
        %524 = vmatpush1.bf16.msra.mxu0 0
        %525 = vmatprep.subr.bf16.mxu0 0
        %526 = vmatpush1.bf16.msra.mxu0 0
        %527 = vmatprep.subr.bf16.mxu0 0
        %528 = vmatpush1.bf16.msra.mxu0 0
        %529 = vmatprep.subr.bf16.mxu0 0
        %530 = vmatpush1.bf16.msra.mxu0 0
        %531 = vmatprep.mubr.bf16.mxu0 0
        %532 = vmatmul.mubr.bf16.gmra.mrb[0].mxu0 %v497
        %v533 = vpop.f32.mrb[0].mxu0
        %v534 = vadd.f32 %v481, %v533
        %v535 = vpop.f32.mrb[0].mxu0
        %v536 = vpop.f32.mrb[0].mxu0
        %v537 = vadd.f32 %v481, %v536
        %v538 = vpop.f32.mrb[0].mxu0
        %539 = vdwg.mxu0
        %v540 = vld [vmem:[%s388] sm:$0xf]
        %v541 = vld [vmem:[%s388 + $0x4] sm:$0xf]
        %v542 = vld [vmem:[%s388 + $0x8] sm:$0xf]
        %v543 = vld [vmem:[%s388 + $0xc] sm:$0xf]
        %v544 = vld [vmem:[%s446] sm:$0x1]
        %v545 = vld [vmem:[%s449] sm:$0x1]
        %v546 = vld [vmem:[#allocation2] sm:$0x3]
        %v547 = vld [vmem:[#allocation3] sm:$0x3]
        %v548 = vpack.c.bf16 %v546, %v546
        %v553 = vunpack.c.l.b16 %v540
        %v554 = vunpack.c.l.b16 %v541
        %v555 = vunpack.c.l.b16 %v542
        %v556 = vunpack.c.l.b16 %v543
        %v557 = vpack.c.b16 %v554, %v553
        %v558 = vpack.c.b16 %v556, %v555
        %v562 = vsel %vm495, %v548, 0
        %564 = vmatprep.subr.bf16.mxu0 0
        %565 = vmatpush1.bf16.msra.mxu0 %v557
        %566 = vmatprep.subr.bf16.mxu0 0
        %567 = vmatpush1.bf16.msra.mxu0 %v558
        %568 = vmatprep.subr.bf16.mxu0 0
        %569 = vmatpush1.bf16.msra.mxu0 0
        %570 = vmatprep.subr.bf16.mxu0 0
        %571 = vmatpush1.bf16.msra.mxu0 0
        %572 = vmatprep.subr.bf16.mxu0 0
        %573 = vmatpush1.bf16.msra.mxu0 0
        %574 = vmatprep.subr.bf16.mxu0 0
        %575 = vmatpush1.bf16.msra.mxu0 0
        %576 = vmatprep.subr.bf16.mxu0 0
        %577 = vmatpush1.bf16.msra.mxu0 0
        %578 = vmatprep.subr.bf16.mxu0 0
        %579 = vmatpush1.bf16.msra.mxu0 0
        %580 = vmatprep.subr.bf16.mxu0 0
        %581 = vmatpush1.bf16.msra.mxu0 0
        %582 = vmatprep.subr.bf16.mxu0 0
        %583 = vmatpush1.bf16.msra.mxu0 0
        %584 = vmatprep.subr.bf16.mxu0 0
        %585 = vmatpush1.bf16.msra.mxu0 0
        %586 = vmatprep.subr.bf16.mxu0 0
        %587 = vmatpush1.bf16.msra.mxu0 0
        %588 = vmatprep.subr.bf16.mxu0 0
        %589 = vmatpush1.bf16.msra.mxu0 0
        %590 = vmatprep.subr.bf16.mxu0 0
        %591 = vmatpush1.bf16.msra.mxu0 0
        %592 = vmatprep.subr.bf16.mxu0 0
        %593 = vmatpush1.bf16.msra.mxu0 0
        %594 = vmatprep.subr.bf16.mxu0 0
        %595 = vmatpush1.bf16.msra.mxu0 0
        %596 = vmatprep.mubr.bf16.mxu0 0
        %597 = vmatmul.mubr.bf16.gmra.mrb[0].mxu0 %v562
        %v598 = vpop.f32.mrb[0].mxu0
        %v599 = vadd.f32 0.0, %v598
        %v600 = vpop.f32.mrb[0].mxu0
        %v601 = vpop.f32.mrb[0].mxu0
        %v602 = vpop.f32.mrb[0].mxu0
        %603 = vdwg.mxu0
        %v604 = vadd.f32 %v534, %v599
        %v605 = vmul.f32 %v604, 0.5
        %v606 = vtanh.pop %v605
        %v607 = vadd.f32 %v606, 1.0
        %v608 = vmul.f32 %v607, 0.5
        %v609 = vtanh.pop %v604
        %611 = vrot.lane.b32.xlu0 %v547, 32
        %v612 = vpop.permute.xlu0 %611
        %v614 = vmul.f32 %v608, %v612
        %616 = vrot.lane.b32.xlu0 %v609, 64
        %v617 = vpop.permute.xlu0 %616
        %v619 = vmul.f32 %v608, %v617
        %621 = vrot.lane.b32.xlu0 %v619, 32
        %v622 = vpop.permute.xlu0 %621
        %v624 = vadd.f32 %v614, %v622
        %v625 = vtanh.pop %v624
        %627 = vrot.lane.b32.xlu0 %v625, 64
        %v628 = vpop.permute.xlu0 %627
        %v630 = vmul.f32 %v608, %v628
        %632 = vrot.lane.b32.xlu0 %v630, 32
        %v633 = vpop.permute.xlu0 %632
        %vm635 = vcmask 254976
        %v636 = vsel %vm635, %v633, 0.0
        %637 = vadd.xlane.f32.xlu0 %v636
        %v638 = vpop.xlane.xlu0 %637
        %v639 = vrcp.pop 32.0
        %v640 = vmul.f32 %v638, %v639
        %v641 = vsub.f32 %v630, %v640
        %v642 = vmul.f32 %v641, %v641
        %644 = vrot.lane.b32.xlu0 %v642, 32
        %v645 = vpop.permute.xlu0 %644
        %v647 = vsel %vm635, %v645, 0.0
        %648 = vadd.xlane.f32.xlu0 %v647
        %v649 = vpop.xlane.xlu0 %648
        %v650 = vmul.f32 %v649, %v639
        %v651 = vadd.f32 %v650, 1e-05
        %v652 = vrsqrt.pop %v651
        %v653 = vmul.f32 %v641, %v652
        %v655 = vlaneseq
        %v656 = vshrl.u32 %v655, 7
        %v657 = vsub.s32 0, %v656
        %v658 = vrot.slane %v544, %v657
        %659 = vrot.lane.b32.xlu0 %v658, 96
        %v660 = vpop.permute.xlu0 %659
        %v662 = vmul.f32 %v653, %v660
        %v664 = vlaneseq
        %v665 = vshrl.u32 %v664, 7
        %v666 = vsub.s32 0, %v665
        %v667 = vrot.slane %v545, %v666
        %668 = vrot.lane.b32.xlu0 %v667, 96
        %v669 = vpop.permute.xlu0 %668
        %v671 = vadd.f32 %v662, %v669
        %v672 = vpack.c.bf16 %v630, %v630
        %674 = vrot.lane.b32.xlu0 %v672, 32
        %v675 = vpop.permute.xlu0 %674
        %v677 = vsel %vm495, %v675, 0
        %679 = vmatprep.subr.bf16.mxu0 0
        %680 = vmatpush1.bf16.msra.mxu0 %v557
        %681 = vmatprep.subr.bf16.mxu0 0
        %682 = vmatpush1.bf16.msra.mxu0 %v558
        %683 = vmatprep.subr.bf16.mxu0 0
        %684 = vmatpush1.bf16.msra.mxu0 0
        %685 = vmatprep.subr.bf16.mxu0 0
        %686 = vmatpush1.bf16.msra.mxu0 0
        %687 = vmatprep.subr.bf16.mxu0 0
        %688 = vmatpush1.bf16.msra.mxu0 0
        %689 = vmatprep.subr.bf16.mxu0 0
        %690 = vmatpush1.bf16.msra.mxu0 0
        %691 = vmatprep.subr.bf16.mxu0 0
        %692 = vmatpush1.bf16.msra.mxu0 0
        %693 = vmatprep.subr.bf16.mxu0 0
        %694 = vmatpush1.bf16.msra.mxu0 0
        %695 = vmatprep.subr.bf16.mxu0 0
        %696 = vmatpush1.bf16.msra.mxu0 0
        %697 = vmatprep.subr.bf16.mxu0 0
        %698 = vmatpush1.bf16.msra.mxu0 0
        %699 = vmatprep.subr.bf16.mxu0 0
        %700 = vmatpush1.bf16.msra.mxu0 0
        %701 = vmatprep.subr.bf16.mxu0 0
        %702 = vmatpush1.bf16.msra.mxu0 0
        %703 = vmatprep.subr.bf16.mxu0 0
        %704 = vmatpush1.bf16.msra.mxu0 0
        %705 = vmatprep.subr.bf16.mxu0 0
        %706 = vmatpush1.bf16.msra.mxu0 0
        %707 = vmatprep.subr.bf16.mxu0 0
        %708 = vmatpush1.bf16.msra.mxu0 0
        %709 = vmatprep.subr.bf16.mxu0 0
        %710 = vmatpush1.bf16.msra.mxu0 0
        %711 = vmatprep.mubr.bf16.mxu0 0
        %712 = vmatmul.mubr.bf16.gmra.mrb[0].mxu0 %v677
        %v713 = vpop.f32.mrb[0].mxu0
        %v714 = vadd.f32 0.0, %v713
        %v715 = vpop.f32.mrb[0].mxu0
        %v716 = vpop.f32.mrb[0].mxu0
        %v717 = vpop.f32.mrb[0].mxu0
        %718 = vdwg.mxu0
        %v720 = vrot.slane %v714, 6
        %v722 = vadd.f32 %v534, %v720
        %v723 = vmul.f32 %v722, 0.5
        %v724 = vtanh.pop %v723
        %v725 = vadd.f32 %v724, 1.0
        %v726 = vmul.f32 %v725, 0.5
        %v727 = vtanh.pop %v722
        %v729 = vrot.slane %v624, 6
        %v731 = vmul.f32 %v726, %v729
        %733 = vrot.lane.b32.xlu0 %v727, 64
        %v734 = vpop.permute.xlu0 %733
        %v736 = vmul.f32 %v726, %v734
        %738 = vrot.lane.b32.xlu0 %v736, 32
        %v739 = vpop.permute.xlu0 %738
        %v741 = vadd.f32 %v731, %v739
        %v742 = vtanh.pop %v741
        %744 = vrot.lane.b32.xlu0 %v742, 64
        %v745 = vpop.permute.xlu0 %744
        %v747 = vmul.f32 %v726, %v745
        %749 = vrot.lane.b32.xlu0 %v747, 32
        %v750 = vpop.permute.xlu0 %749
        %vm752 = vcmask 257026
        %v753 = vsel %vm752, %v750, 0.0
        %754 = vadd.xlane.f32.xlu0 %v753
        %v755 = vpop.xlane.xlu0 %754
        %v756 = vmul.f32 %v755, %v639
        %v757 = vsub.f32 %v747, %v756
        %v758 = vmul.f32 %v757, %v757
        %760 = vrot.lane.b32.xlu0 %v758, 32
        %v761 = vpop.permute.xlu0 %760
        %v763 = vsel %vm752, %v761, 0.0
        %764 = vadd.xlane.f32.xlu0 %v763
        %v765 = vpop.xlane.xlu0 %764
        %v766 = vmul.f32 %v765, %v639
        %v767 = vadd.f32 %v766, 1e-05
        %v768 = vrsqrt.pop %v767
        %v769 = vmul.f32 %v757, %v768
        %v770 = vmul.f32 %v769, %v660
        %v771 = vadd.f32 %v770, %v669
        %v772 = vpack.c.bf16 %v747, %v747
        %v774 = vrot.slane %v772, 1
        %775 = vrot.lane.b32.xlu0 %v774, 32
        %v776 = vpop.permute.xlu0 %775
        %v778 = vsel %vm495, %v776, 0
        %780 = vmatprep.subr.bf16.mxu0 0
        %781 = vmatpush1.bf16.msra.mxu0 %v557
        %782 = vmatprep.subr.bf16.mxu0 0
        %783 = vmatpush1.bf16.msra.mxu0 %v558
        %784 = vmatprep.subr.bf16.mxu0 0
        %785 = vmatpush1.bf16.msra.mxu0 0
        %786 = vmatprep.subr.bf16.mxu0 0
        %787 = vmatpush1.bf16.msra.mxu0 0
        %788 = vmatprep.subr.bf16.mxu0 0
        %789 = vmatpush1.bf16.msra.mxu0 0
        %790 = vmatprep.subr.bf16.mxu0 0
        %791 = vmatpush1.bf16.msra.mxu0 0
        %792 = vmatprep.subr.bf16.mxu0 0
        %793 = vmatpush1.bf16.msra.mxu0 0
        %794 = vmatprep.subr.bf16.mxu0 0
        %795 = vmatpush1.bf16.msra.mxu0 0
        %796 = vmatprep.subr.bf16.mxu0 0
        %797 = vmatpush1.bf16.msra.mxu0 0
        %798 = vmatprep.subr.bf16.mxu0 0
        %799 = vmatpush1.bf16.msra.mxu0 0
        %800 = vmatprep.subr.bf16.mxu0 0
        %801 = vmatpush1.bf16.msra.mxu0 0
        %802 = vmatprep.subr.bf16.mxu0 0
        %803 = vmatpush1.bf16.msra.mxu0 0
        %804 = vmatprep.subr.bf16.mxu0 0
        %805 = vmatpush1.bf16.msra.mxu0 0
        %806 = vmatprep.subr.bf16.mxu0 0
        %807 = vmatpush1.bf16.msra.mxu0 0
        %808 = vmatprep.subr.bf16.mxu0 0
        %809 = vmatpush1.bf16.msra.mxu0 0
        %810 = vmatprep.subr.bf16.mxu0 0
        %811 = vmatpush1.bf16.msra.mxu0 0
        %812 = vmatprep.mubr.bf16.mxu0 0
        %813 = vmatmul.mubr.bf16.gmra.mrb[0].mxu0 %v778
        %v814 = vpop.f32.mrb[0].mxu0
        %v815 = vadd.f32 0.0, %v814
        %v816 = vpop.f32.mrb[0].mxu0
        %v817 = vpop.f32.mrb[0].mxu0
        %v818 = vpop.f32.mrb[0].mxu0
        %819 = vdwg.mxu0
        %v821 = vrot.slane %v815, 4
        %v823 = vadd.f32 %v534, %v821
        %v824 = vmul.f32 %v823, 0.5
        %v825 = vtanh.pop %v824
        %v826 = vadd.f32 %v825, 1.0
        %v827 = vmul.f32 %v826, 0.5
        %v828 = vtanh.pop %v823
        %v830 = vrot.slane %v741, 6
        %v832 = vmul.f32 %v827, %v830
        %834 = vrot.lane.b32.xlu0 %v828, 64
        %v835 = vpop.permute.xlu0 %834
        %v837 = vmul.f32 %v827, %v835
        %839 = vrot.lane.b32.xlu0 %v837, 32
        %v840 = vpop.permute.xlu0 %839
        %v842 = vadd.f32 %v832, %v840
        %v843 = vtanh.pop %v842
        %845 = vrot.lane.b32.xlu0 %v843, 64
        %v846 = vpop.permute.xlu0 %845
        %v848 = vmul.f32 %v827, %v846
        %850 = vrot.lane.b32.xlu0 %v848, 32
        %v851 = vpop.permute.xlu0 %850
        %vm853 = vcmask 259076
        %v854 = vsel %vm853, %v851, 0.0
        %855 = vadd.xlane.f32.xlu0 %v854
        %v856 = vpop.xlane.xlu0 %855
        %v857 = vmul.f32 %v856, %v639
        %v858 = vsub.f32 %v848, %v857
        %v859 = vmul.f32 %v858, %v858
        %861 = vrot.lane.b32.xlu0 %v859, 32
        %v862 = vpop.permute.xlu0 %861
        %v864 = vsel %vm853, %v862, 0.0
        %865 = vadd.xlane.f32.xlu0 %v864
        %v866 = vpop.xlane.xlu0 %865
        %v867 = vmul.f32 %v866, %v639
        %v868 = vadd.f32 %v867, 1e-05
        %v869 = vrsqrt.pop %v868
        %v870 = vmul.f32 %v858, %v869
        %v871 = vmul.f32 %v870, %v660
        %v872 = vadd.f32 %v871, %v669
        %v873 = vpack.c.bf16 %v848, %v848
        %v875 = vrot.slane %v873, 2
        %876 = vrot.lane.b32.xlu0 %v875, 32
        %v877 = vpop.permute.xlu0 %876
        %v879 = vsel %vm495, %v877, 0
        %881 = vmatprep.subr.bf16.mxu0 0
        %882 = vmatpush1.bf16.msra.mxu0 %v557
        %883 = vmatprep.subr.bf16.mxu0 0
        %884 = vmatpush1.bf16.msra.mxu0 %v558
        %885 = vmatprep.subr.bf16.mxu0 0
        %886 = vmatpush1.bf16.msra.mxu0 0
        %887 = vmatprep.subr.bf16.mxu0 0
        %888 = vmatpush1.bf16.msra.mxu0 0
        %889 = vmatprep.subr.bf16.mxu0 0
        %890 = vmatpush1.bf16.msra.mxu0 0
        %891 = vmatprep.subr.bf16.mxu0 0
        %892 = vmatpush1.bf16.msra.mxu0 0
        %893 = vmatprep.subr.bf16.mxu0 0
        %894 = vmatpush1.bf16.msra.mxu0 0
        %895 = vmatprep.subr.bf16.mxu0 0
        %896 = vmatpush1.bf16.msra.mxu0 0
        %897 = vmatprep.subr.bf16.mxu0 0
        %898 = vmatpush1.bf16.msra.mxu0 0
        %899 = vmatprep.subr.bf16.mxu0 0
        %900 = vmatpush1.bf16.msra.mxu0 0
        %901 = vmatprep.subr.bf16.mxu0 0
        %902 = vmatpush1.bf16.msra.mxu0 0
        %903 = vmatprep.subr.bf16.mxu0 0
        %904 = vmatpush1.bf16.msra.mxu0 0
        %905 = vmatprep.subr.bf16.mxu0 0
        %906 = vmatpush1.bf16.msra.mxu0 0
        %907 = vmatprep.subr.bf16.mxu0 0
        %908 = vmatpush1.bf16.msra.mxu0 0
        %909 = vmatprep.subr.bf16.mxu0 0
        %910 = vmatpush1.bf16.msra.mxu0 0
        %911 = vmatprep.subr.bf16.mxu0 0
        %912 = vmatpush1.bf16.msra.mxu0 0
        %913 = vmatprep.mubr.bf16.mxu0 0
        %914 = vmatmul.mubr.bf16.gmra.mrb[0].mxu0 %v879
        %v915 = vpop.f32.mrb[0].mxu0
        %v916 = vadd.f32 0.0, %v915
        %v917 = vpop.f32.mrb[0].mxu0
        %v918 = vpop.f32.mrb[0].mxu0
        %v919 = vpop.f32.mrb[0].mxu0
        %920 = vdwg.mxu0
        %v922 = vrot.slane %v916, 2
        %v924 = vadd.f32 %v534, %v922
        %v925 = vmul.f32 %v924, 0.5
        %v926 = vtanh.pop %v925
        %v927 = vadd.f32 %v926, 1.0
        %v928 = vmul.f32 %v927, 0.5
        %v929 = vtanh.pop %v924
        %v931 = vrot.slane %v842, 6
        %v933 = vmul.f32 %v928, %v931
        %935 = vrot.lane.b32.xlu0 %v929, 64
        %v936 = vpop.permute.xlu0 %935
        %v938 = vmul.f32 %v928, %v936
        %940 = vrot.lane.b32.xlu0 %v938, 32
        %v941 = vpop.permute.xlu0 %940
        %v943 = vadd.f32 %v933, %v941
        %v944 = vtanh.pop %v943
        %946 = vrot.lane.b32.xlu0 %v944, 64
        %v947 = vpop.permute.xlu0 %946
        %v949 = vmul.f32 %v928, %v947
        %951 = vrot.lane.b32.xlu0 %v949, 32
        %v952 = vpop.permute.xlu0 %951
        %vm954 = vcmask 261126
        %v955 = vsel %vm954, %v952, 0.0
        %956 = vadd.xlane.f32.xlu0 %v955
        %v957 = vpop.xlane.xlu0 %956
        %v958 = vmul.f32 %v957, %v639
        %v959 = vsub.f32 %v949, %v958
        %v960 = vmul.f32 %v959, %v959
        %962 = vrot.lane.b32.xlu0 %v960, 32
        %v963 = vpop.permute.xlu0 %962
        %v965 = vsel %vm954, %v963, 0.0
        %966 = vadd.xlane.f32.xlu0 %v965
        %v967 = vpop.xlane.xlu0 %966
        %v968 = vmul.f32 %v967, %v639
        %v969 = vadd.f32 %v968, 1e-05
        %v970 = vrsqrt.pop %v969
        %v971 = vmul.f32 %v959, %v970
        %v972 = vmul.f32 %v971, %v660
        %v973 = vadd.f32 %v972, %v669
        %v974 = vpack.c.bf16 %v949, %v949
        %v976 = vrot.slane %v974, 3
        %977 = vrot.lane.b32.xlu0 %v976, 32
        %v978 = vpop.permute.xlu0 %977
        %v980 = vsel %vm495, %v978, 0
        %982 = vmatprep.subr.bf16.mxu0 0
        %983 = vmatpush1.bf16.msra.mxu0 %v557
        %984 = vmatprep.subr.bf16.mxu0 0
        %985 = vmatpush1.bf16.msra.mxu0 %v558
        %986 = vmatprep.subr.bf16.mxu0 0
        %987 = vmatpush1.bf16.msra.mxu0 0
        %988 = vmatprep.subr.bf16.mxu0 0
        %989 = vmatpush1.bf16.msra.mxu0 0
        %990 = vmatprep.subr.bf16.mxu0 0
        %991 = vmatpush1.bf16.msra.mxu0 0
        %992 = vmatprep.subr.bf16.mxu0 0
        %993 = vmatpush1.bf16.msra.mxu0 0
        %994 = vmatprep.subr.bf16.mxu0 0
        %995 = vmatpush1.bf16.msra.mxu0 0
        %996 = vmatprep.subr.bf16.mxu0 0
        %997 = vmatpush1.bf16.msra.mxu0 0
        %998 = vmatprep.subr.bf16.mxu0 0
        %999 = vmatpush1.bf16.msra.mxu0 0
        %1000 = vmatprep.subr.bf16.mxu0 0
        %1001 = vmatpush1.bf16.msra.mxu0 0
        %1002 = vmatprep.subr.bf16.mxu0 0
        %1003 = vmatpush1.bf16.msra.mxu0 0
        %1004 = vmatprep.subr.bf16.mxu0 0
        %1005 = vmatpush1.bf16.msra.mxu0 0
        %1006 = vmatprep.subr.bf16.mxu0 0
        %1007 = vmatpush1.bf16.msra.mxu0 0
        %1008 = vmatprep.subr.bf16.mxu0 0
        %1009 = vmatpush1.bf16.msra.mxu0 0
        %1010 = vmatprep.subr.bf16.mxu0 0
        %1011 = vmatpush1.bf16.msra.mxu0 0
        %1012 = vmatprep.subr.bf16.mxu0 0
        %1013 = vmatpush1.bf16.msra.mxu0 0
        %1014 = vmatprep.mubr.bf16.mxu0 0
        %1015 = vmatmul.mubr.bf16.gmra.mrb[0].mxu0 %v980
        %v1016 = vpop.f32.mrb[0].mxu0
        %v1017 = vadd.f32 0.0, %v1016
        %v1018 = vpop.f32.mrb[0].mxu0
        %v1019 = vpop.f32.mrb[0].mxu0
        %v1020 = vpop.f32.mrb[0].mxu0
        %1021 = vdwg.mxu0
        %v1022 = vadd.f32 %v537, %v1017
        %v1023 = vmul.f32 %v1022, 0.5
        %v1024 = vtanh.pop %v1023
        %v1025 = vadd.f32 %v1024, 1.0
        %v1026 = vmul.f32 %v1025, 0.5
        %v1027 = vtanh.pop %v1022
        %v1029 = vrot.slane %v943, 6
        %v1031 = vmul.f32 %v1026, %v1029
        %1033 = vrot.lane.b32.xlu0 %v1027, 64
        %v1034 = vpop.permute.xlu0 %1033
        %v1036 = vmul.f32 %v1026, %v1034
        %1038 = vrot.lane.b32.xlu0 %v1036, 32
        %v1039 = vpop.permute.xlu0 %1038
        %v1041 = vadd.f32 %v1031, %v1039
        %v1042 = vtanh.pop %v1041
        %1044 = vrot.lane.b32.xlu0 %v1042, 64
        %v1045 = vpop.permute.xlu0 %1044
        %v1047 = vmul.f32 %v1026, %v1045
        %1049 = vrot.lane.b32.xlu0 %v1047, 32
        %v1050 = vpop.permute.xlu0 %1049
        %v1052 = vsel %vm635, %v1050, 0.0
        %1053 = vadd.xlane.f32.xlu0 %v1052
        %v1054 = vpop.xlane.xlu0 %1053
        %v1055 = vmul.f32 %v1054, %v639
        %v1056 = vsub.f32 %v1047, %v1055
        %v1057 = vmul.f32 %v1056, %v1056
        %1059 = vrot.lane.b32.xlu0 %v1057, 32
        %v1060 = vpop.permute.xlu0 %1059
        %v1062 = vsel %vm635, %v1060, 0.0
        %1063 = vadd.xlane.f32.xlu0 %v1062
        %v1064 = vpop.xlane.xlu0 %1063
        %v1065 = vmul.f32 %v1064, %v639
        %v1066 = vadd.f32 %v1065, 1e-05
        %v1067 = vrsqrt.pop %v1066
        %v1068 = vmul.f32 %v1056, %v1067
        %v1069 = vmul.f32 %v1068, %v660
        %v1070 = vadd.f32 %v1069, %v669
        %v1071 = vpack.c.bf16 %v1047, %v1047
        %1073 = vrot.lane.b32.xlu0 %v1071, 32
        %v1074 = vpop.permute.xlu0 %1073
        %v1076 = vsel %vm495, %v1074, 0
        %1078 = vmatprep.subr.bf16.mxu0 0
        %1079 = vmatpush1.bf16.msra.mxu0 %v557
        %1080 = vmatprep.subr.bf16.mxu0 0
        %1081 = vmatpush1.bf16.msra.mxu0 %v558
        %1082 = vmatprep.subr.bf16.mxu0 0
        %1083 = vmatpush1.bf16.msra.mxu0 0
        %1084 = vmatprep.subr.bf16.mxu0 0
        %1085 = vmatpush1.bf16.msra.mxu0 0
        %1086 = vmatprep.subr.bf16.mxu0 0
        %1087 = vmatpush1.bf16.msra.mxu0 0
        %1088 = vmatprep.subr.bf16.mxu0 0
        %1089 = vmatpush1.bf16.msra.mxu0 0
        %1090 = vmatprep.subr.bf16.mxu0 0
        %1091 = vmatpush1.bf16.msra.mxu0 0
        %1092 = vmatprep.subr.bf16.mxu0 0
        %1093 = vmatpush1.bf16.msra.mxu0 0
        %1094 = vmatprep.subr.bf16.mxu0 0
        %1095 = vmatpush1.bf16.msra.mxu0 0
        %1096 = vmatprep.subr.bf16.mxu0 0
        %1097 = vmatpush1.bf16.msra.mxu0 0
        %1098 = vmatprep.subr.bf16.mxu0 0
        %1099 = vmatpush1.bf16.msra.mxu0 0
        %1100 = vmatprep.subr.bf16.mxu0 0
        %1101 = vmatpush1.bf16.msra.mxu0 0
        %1102 = vmatprep.subr.bf16.mxu0 0
        %1103 = vmatpush1.bf16.msra.mxu0 0
        %1104 = vmatprep.subr.bf16.mxu0 0
        %1105 = vmatpush1.bf16.msra.mxu0 0
        %1106 = vmatprep.subr.bf16.mxu0 0
        %1107 = vmatpush1.bf16.msra.mxu0 0
        %1108 = vmatprep.subr.bf16.mxu0 0
        %1109 = vmatpush1.bf16.msra.mxu0 0
        %1110 = vmatprep.mubr.bf16.mxu0 0
        %1111 = vmatmul.mubr.bf16.gmra.mrb[0].mxu0 %v1076
        %v1112 = vpop.f32.mrb[0].mxu0
        %v1113 = vadd.f32 0.0, %v1112
        %v1114 = vpop.f32.mrb[0].mxu0
        %v1115 = vpop.f32.mrb[0].mxu0
        %v1116 = vpop.f32.mrb[0].mxu0
        %1117 = vdwg.mxu0
        %v1119 = vrot.slane %v1113, 6
        %v1121 = vadd.f32 %v537, %v1119
        %v1122 = vmul.f32 %v1121, 0.5
        %v1123 = vtanh.pop %v1122
        %v1124 = vadd.f32 %v1123, 1.0
        %v1125 = vmul.f32 %v1124, 0.5
        %v1126 = vtanh.pop %v1121
        %v1128 = vrot.slane %v1041, 6
        %v1130 = vmul.f32 %v1125, %v1128
        %1132 = vrot.lane.b32.xlu0 %v1126, 64
        %v1133 = vpop.permute.xlu0 %1132
        %v1135 = vmul.f32 %v1125, %v1133
        %1137 = vrot.lane.b32.xlu0 %v1135, 32
        %v1138 = vpop.permute.xlu0 %1137
        %v1140 = vadd.f32 %v1130, %v1138
        %v1141 = vtanh.pop %v1140
        %1143 = vrot.lane.b32.xlu0 %v1141, 64
        %v1144 = vpop.permute.xlu0 %1143
        %v1146 = vmul.f32 %v1125, %v1144
        %1148 = vrot.lane.b32.xlu0 %v1146, 32
        %v1149 = vpop.permute.xlu0 %1148
        %v1151 = vsel %vm752, %v1149, 0.0
        %1152 = vadd.xlane.f32.xlu0 %v1151
        %v1153 = vpop.xlane.xlu0 %1152
        %v1154 = vmul.f32 %v1153, %v639
        %v1155 = vsub.f32 %v1146, %v1154
        %v1156 = vmul.f32 %v1155, %v1155
        %1158 = vrot.lane.b32.xlu0 %v1156, 32
        %v1159 = vpop.permute.xlu0 %1158
        %v1161 = vsel %vm752, %v1159, 0.0
        %1162 = vadd.xlane.f32.xlu0 %v1161
        %v1163 = vpop.xlane.xlu0 %1162
        %v1164 = vmul.f32 %v1163, %v639
        %v1165 = vadd.f32 %v1164, 1e-05
        %v1166 = vrsqrt.pop %v1165
        %v1167 = vmul.f32 %v1155, %v1166
        %v1168 = vmul.f32 %v1167, %v660
        %v1169 = vadd.f32 %v1168, %v669
        %v1170 = vpack.c.bf16 %v1146, %v1146
        %v1172 = vrot.slane %v1170, 1
        %1173 = vrot.lane.b32.xlu0 %v1172, 32
        %v1174 = vpop.permute.xlu0 %1173
        %v1176 = vsel %vm495, %v1174, 0
        %1178 = vmatprep.subr.bf16.mxu0 0
        %1179 = vmatpush1.bf16.msra.mxu0 %v557
        %1180 = vmatprep.subr.bf16.mxu0 0
        %1181 = vmatpush1.bf16.msra.mxu0 %v558
        %1182 = vmatprep.subr.bf16.mxu0 0
        %1183 = vmatpush1.bf16.msra.mxu0 0
        %1184 = vmatprep.subr.bf16.mxu0 0
        %1185 = vmatpush1.bf16.msra.mxu0 0
        %1186 = vmatprep.subr.bf16.mxu0 0
        %1187 = vmatpush1.bf16.msra.mxu0 0
        %1188 = vmatprep.subr.bf16.mxu0 0
        %1189 = vmatpush1.bf16.msra.mxu0 0
        %1190 = vmatprep.subr.bf16.mxu0 0
        %1191 = vmatpush1.bf16.msra.mxu0 0
        %1192 = vmatprep.subr.bf16.mxu0 0
        %1193 = vmatpush1.bf16.msra.mxu0 0
        %1194 = vmatprep.subr.bf16.mxu0 0
        %1195 = vmatpush1.bf16.msra.mxu0 0
        %1196 = vmatprep.subr.bf16.mxu0 0
        %1197 = vmatpush1.bf16.msra.mxu0 0
        %1198 = vmatprep.subr.bf16.mxu0 0
        %1199 = vmatpush1.bf16.msra.mxu0 0
        %1200 = vmatprep.subr.bf16.mxu0 0
        %1201 = vmatpush1.bf16.msra.mxu0 0
        %1202 = vmatprep.subr.bf16.mxu0 0
        %1203 = vmatpush1.bf16.msra.mxu0 0
        %1204 = vmatprep.subr.bf16.mxu0 0
        %1205 = vmatpush1.bf16.msra.mxu0 0
        %1206 = vmatprep.subr.bf16.mxu0 0
        %1207 = vmatpush1.bf16.msra.mxu0 0
        %1208 = vmatprep.subr.bf16.mxu0 0
        %1209 = vmatpush1.bf16.msra.mxu0 0
        %1210 = vmatprep.mubr.bf16.mxu0 0
        %1211 = vmatmul.mubr.bf16.gmra.mrb[0].mxu0 %v1176
        %v1212 = vpop.f32.mrb[0].mxu0
        %v1213 = vadd.f32 0.0, %v1212
        %v1214 = vpop.f32.mrb[0].mxu0
        %v1215 = vpop.f32.mrb[0].mxu0
        %v1216 = vpop.f32.mrb[0].mxu0
        %1217 = vdwg.mxu0
        %v1219 = vrot.slane %v1213, 4
        %v1221 = vadd.f32 %v537, %v1219
        %v1222 = vmul.f32 %v1221, 0.5
        %v1223 = vtanh.pop %v1222
        %v1224 = vadd.f32 %v1223, 1.0
        %v1225 = vmul.f32 %v1224, 0.5
        %v1226 = vtanh.pop %v1221
        %v1228 = vrot.slane %v1140, 6
        %v1230 = vmul.f32 %v1225, %v1228
        %1232 = vrot.lane.b32.xlu0 %v1226, 64
        %v1233 = vpop.permute.xlu0 %1232
        %v1235 = vmul.f32 %v1225, %v1233
        %1237 = vrot.lane.b32.xlu0 %v1235, 32
        %v1238 = vpop.permute.xlu0 %1237
        %v1240 = vadd.f32 %v1230, %v1238
        %v1241 = vtanh.pop %v1240
        %1243 = vrot.lane.b32.xlu0 %v1241, 64
        %v1244 = vpop.permute.xlu0 %1243
        %v1246 = vmul.f32 %v1225, %v1244
        %1248 = vrot.lane.b32.xlu0 %v1246, 32
        %v1249 = vpop.permute.xlu0 %1248
        %v1251 = vsel %vm853, %v1249, 0.0
        %1252 = vadd.xlane.f32.xlu0 %v1251
        %v1253 = vpop.xlane.xlu0 %1252
        %v1254 = vmul.f32 %v1253, %v639
        %v1255 = vsub.f32 %v1246, %v1254
        %v1256 = vmul.f32 %v1255, %v1255
        %1258 = vrot.lane.b32.xlu0 %v1256, 32
        %v1259 = vpop.permute.xlu0 %1258
        %v1261 = vsel %vm853, %v1259, 0.0
        %1262 = vadd.xlane.f32.xlu0 %v1261
        %v1263 = vpop.xlane.xlu0 %1262
        %v1264 = vmul.f32 %v1263, %v639
        %v1265 = vadd.f32 %v1264, 1e-05
        %v1266 = vrsqrt.pop %v1265
        %v1267 = vmul.f32 %v1255, %v1266
        %v1268 = vmul.f32 %v1267, %v660
        %v1269 = vadd.f32 %v1268, %v669
        %v1270 = vpack.c.bf16 %v1246, %v1246
        %v1272 = vrot.slane %v1270, 2
        %1273 = vrot.lane.b32.xlu0 %v1272, 32
        %v1274 = vpop.permute.xlu0 %1273
        %v1276 = vsel %vm495, %v1274, 0
        %1278 = vmatprep.subr.bf16.mxu0 0
        %1279 = vmatpush1.bf16.msra.mxu0 %v557
        %1280 = vmatprep.subr.bf16.mxu0 0
        %1281 = vmatpush1.bf16.msra.mxu0 %v558
        %1282 = vmatprep.subr.bf16.mxu0 0
        %1283 = vmatpush1.bf16.msra.mxu0 0
        %1284 = vmatprep.subr.bf16.mxu0 0
        %1285 = vmatpush1.bf16.msra.mxu0 0
        %1286 = vmatprep.subr.bf16.mxu0 0
        %1287 = vmatpush1.bf16.msra.mxu0 0
        %1288 = vmatprep.subr.bf16.mxu0 0
        %1289 = vmatpush1.bf16.msra.mxu0 0
        %1290 = vmatprep.subr.bf16.mxu0 0
        %1291 = vmatpush1.bf16.msra.mxu0 0
        %1292 = vmatprep.subr.bf16.mxu0 0
        %1293 = vmatpush1.bf16.msra.mxu0 0
        %1294 = vmatprep.subr.bf16.mxu0 0
        %1295 = vmatpush1.bf16.msra.mxu0 0
        %1296 = vmatprep.subr.bf16.mxu0 0
        %1297 = vmatpush1.bf16.msra.mxu0 0
        %1298 = vmatprep.subr.bf16.mxu0 0
        %1299 = vmatpush1.bf16.msra.mxu0 0
        %1300 = vmatprep.subr.bf16.mxu0 0
        %1301 = vmatpush1.bf16.msra.mxu0 0
        %1302 = vmatprep.subr.bf16.mxu0 0
        %1303 = vmatpush1.bf16.msra.mxu0 0
        %1304 = vmatprep.subr.bf16.mxu0 0
        %1305 = vmatpush1.bf16.msra.mxu0 0
        %1306 = vmatprep.subr.bf16.mxu0 0
        %1307 = vmatpush1.bf16.msra.mxu0 0
        %1308 = vmatprep.subr.bf16.mxu0 0
        %1309 = vmatpush1.bf16.msra.mxu0 0
        %1310 = vmatprep.mubr.bf16.mxu0 0
        %1311 = vmatmul.mubr.bf16.gmra.mrb[0].mxu0 %v1276
        %v1312 = vpop.f32.mrb[0].mxu0
        %v1313 = vadd.f32 0.0, %v1312
        %v1314 = vpop.f32.mrb[0].mxu0
        %v1315 = vpop.f32.mrb[0].mxu0
        %v1316 = vpop.f32.mrb[0].mxu0
        %1317 = vdwg.mxu0
        %v1319 = vrot.slane %v1313, 2
        %v1321 = vadd.f32 %v537, %v1319
        %v1322 = vmul.f32 %v1321, 0.5
        %v1323 = vtanh.pop %v1322
        %v1324 = vadd.f32 %v1323, 1.0
        %v1325 = vmul.f32 %v1324, 0.5
        %v1326 = vtanh.pop %v1321
        %v1328 = vrot.slane %v1240, 6
        %v1330 = vmul.f32 %v1325, %v1328
        %1332 = vrot.lane.b32.xlu0 %v1326, 64
        %v1333 = vpop.permute.xlu0 %1332
        %v1335 = vmul.f32 %v1325, %v1333
        %1337 = vrot.lane.b32.xlu0 %v1335, 32
        %v1338 = vpop.permute.xlu0 %1337
        %v1340 = vadd.f32 %v1330, %v1338
        %v1341 = vtanh.pop %v1340
        %1343 = vrot.lane.b32.xlu0 %v1341, 64
        %v1344 = vpop.permute.xlu0 %1343
        %v1346 = vmul.f32 %v1325, %v1344
        %1348 = vrot.lane.b32.xlu0 %v1346, 32
        %v1349 = vpop.permute.xlu0 %1348
        %v1351 = vsel %vm954, %v1349, 0.0
        %1352 = vadd.xlane.f32.xlu0 %v1351
        %v1353 = vpop.xlane.xlu0 %1352
        %v1354 = vmul.f32 %v1353, %v639
        %v1355 = vsub.f32 %v1346, %v1354
        %v1356 = vmul.f32 %v1355, %v1355
        %1358 = vrot.lane.b32.xlu0 %v1356, 32
        %v1359 = vpop.permute.xlu0 %1358
        %v1361 = vsel %vm954, %v1359, 0.0
        %1362 = vadd.xlane.f32.xlu0 %v1361
        %v1363 = vpop.xlane.xlu0 %1362
        %v1364 = vmul.f32 %v1363, %v639
        %v1365 = vadd.f32 %v1364, 1e-05
        %v1366 = vrsqrt.pop %v1365
        %v1367 = vmul.f32 %v1355, %v1366
        %v1368 = vmul.f32 %v1367, %v660
        %v1369 = vadd.f32 %v1368, %v669
        %1370 = vst.msk [vmem:[#allocation2 - $0x6] sm:$0xc0] %vm954, %v1349
        %1372 = vrot.lane.b32.xlu0 %v1340, 96
        %v1373 = vpop.permute.xlu0 %1372
        %1375 = vst.msk [vmem:[#allocation3 - $0x6] sm:$0xc0] %vm954, %v1373
        %vm1376 = vcmask 1041408
        %v1377 = vsel %vm1376, %v671, %v771
        %vm1378 = vcmask 1043456
        %v1379 = vsel %vm1378, %v1377, %v872
        %vm1380 = vcmask 1045504
        %v1381 = vsel %vm1380, %v1379, %v973
        %v1382 = vsel %vm1376, %v1070, %v1169
        %v1383 = vsel %vm1378, %v1382, %v1269
        %v1384 = vsel %vm1380, %v1383, %v1369
        %1387 = vrot.lane.b32.xlu0 %v1381, 32
        %v1388 = vpop.permute.xlu0 %1387
        %1389 = vrot.lane.b32.xlu0 %v1384, 32
        %v1390 = vpop.permute.xlu0 %1389
        %1393 = vst.msk [vmem:[%s463] sm:$0xff] %vm495, %v1388
        %1394 = vst.msk [vmem:[%s463 + $0x8] sm:$0xff] %vm495, %v1390
        %1395 = vst.msk [vmem:[#allocation11] sm:$0xff] %vm495, %v1388
        %1396 = vst.msk [vmem:[#allocation11 + $0x8] sm:$0xff] %vm495, %v1390
        // Predicated region
        $region61: #{tpu_custom_call.1} parent=43 // pred_check
          %p1397 = pneg %p452
        $region62: #{tpu_custom_call.1} parent=43 // pred_check_branch
          %1399 = sbr.rel (%p1397) target = $region64
        $region63: #{tpu_custom_call.1} parent=43 // pred_region
          %1400 = vst.msk [vmem:[%s432 - $0x6] sm:$0xc0] %vm954, %v1349
          %1401 = vst.msk [vmem:[%s439 - $0x6] sm:$0xc0] %vm954, %v1373
        $region64: #{tpu_custom_call.1} parent=43 // pred_fallthru
          _
        %s1402 = sand.u32 %s28, 1
        %s1403 = scalar_lea.sflag [#allocation13], %s1402
        %s1404 = sand.u32 %s230, 1
        %s1405 = smul.addr %s1404, 2
        %s1406 = scalar_lea.vmem [#allocation12], %s1405
        %s1407 = sand.u32 %s28, 1
        %s1408 = scalar_lea.sflag [#allocation13], %s1407
        %s1409 = sand.u32 %s256, 1
        %s1410 = smul.addr %s1409, 2
        %s1411 = scalar_lea.vmem [#allocation14], %s1410
        // Predicated region
        $region65: #{tpu_custom_call.1} parent=43 // pred_check
          %p1412 = pneg %p214
        $region66: #{tpu_custom_call.1} parent=43 // pred_check_branch
          %1414 = sbr.rel (%p1412) target = $region68
        $region67: #{tpu_custom_call.1} parent=43 // pred_region
          %s1415 = smul.u32 2, %s33
          %s1417 = ssub.s32 256, 256
          %1418 = vsyncadd [#allocation7], %s1417
          %s1419 = smul.addr %s1415, 128
          %s1420 = scalar_lea.hbm %s6, %s1419
          %s1421 = sshll.u32 [#allocation11], 4
          %s1422 = int_to_ptr.vmem [resolvable:$true] %s1421
          %1427 = dma.vmem_to_hbm [thread:$0]  %s1422, 256, %s1420, [#allocation7], 128, 128, 8
        $region68: #{tpu_custom_call.1} parent=43 // pred_fallthru
          _
        // Predicated region
        $region69: #{tpu_custom_call.1} parent=43 // pred_check
          %p1428 = pneg %p240
        $region70: #{tpu_custom_call.1} parent=43 // pred_check_branch
          %1430 = sbr.rel (%p1428) target = $region72
        $region71: #{tpu_custom_call.1} parent=43 // pred_region
          %s1432 = ssub.s32 32, 32
          %1433 = vsyncadd %s1403, %s1432
          %s1434 = smul.addr %s32, 32
          %s1435 = scalar_lea.hbm %s7, %s1434
          %s1437 = sshll.u32 %s1406, 4
          %s1438 = int_to_ptr.vmem [resolvable:$true] %s1437
          %1440 = dma.vmem_to_hbm [thread:$0]  %s1438, 32, %s1435, %s1403
        $region72: #{tpu_custom_call.1} parent=43 // pred_fallthru
          _
        // Predicated region
        $region73: #{tpu_custom_call.1} parent=43 // pred_check
          %p1441 = pneg %p266
        $region74: #{tpu_custom_call.1} parent=43 // pred_check_branch
          %1443 = sbr.rel (%p1441) target = $region76
        $region75: #{tpu_custom_call.1} parent=43 // pred_region
          %s1445 = ssub.s32 32, 32
          %1446 = vsyncadd %s1408, %s1445
          %s1447 = smul.addr %s32, 32
          %s1448 = scalar_lea.hbm %s8, %s1447
          %s1450 = sshll.u32 %s1411, 4
          %s1451 = int_to_ptr.vmem [resolvable:$true] %s1450
          %1453 = dma.vmem_to_hbm [thread:$0]  %s1451, 32, %s1448, %s1408
        $region76: #{tpu_custom_call.1} parent=43 // pred_fallthru
          _
        // Predicated region
        $region77: #{tpu_custom_call.1} parent=43 // pred_check
          %p1454 = pneg %p214
        $region78: #{tpu_custom_call.1} parent=43 // pred_check_branch
          %1456 = sbr.rel (%p1454) target = $region80
        $region79: #{tpu_custom_call.1} parent=43 // pred_region
          %1457 = dma.done [#allocation7], 256
        $region80: #{tpu_custom_call.1} parent=43 // pred_fallthru
          _
      $region44: #{tpu_custom_call.1} parent=5 // pred_fallthru
        _
      %p1458 = scmp.le.s32.totalorder 2, %s23
      // Predicated region
      $region81: #{tpu_custom_call.1} parent=5 // pred_check
        %p1459 = pneg %p1458
      $region82: #{tpu_custom_call.1} parent=5 // pred_check_branch
        %1461 = sbr.rel (%p1459) target = $region84
      $region83: #{tpu_custom_call.1} parent=5 // pred_region
        %s1462 = ssub.s32 %s23, 2
        // Predicated region
        $region85: #{tpu_custom_call.1} parent=83 // pred_check
          %p1463 = pneg %p246
        $region86: #{tpu_custom_call.1} parent=83 // pred_check_branch
          %1465 = sbr.rel (%p1463) target = $region88
        $region87: #{tpu_custom_call.1} parent=83 // pred_region
          %s1466 = sand.u32 %s29, 1
          %s1467 = scalar_lea.sflag [#allocation13], %s1466
          %s1468 = sand.u32 %s231, 1
          %s1469 = smul.addr %s1468, 2
          %s1470 = scalar_lea.vmem [#allocation12], %s1469
          %1471 = dma.done %s1467, 32
        $region88: #{tpu_custom_call.1} parent=83 // pred_fallthru
          _
        // Predicated region
        $region89: #{tpu_custom_call.1} parent=83 // pred_check
          %p1472 = pneg %p272
        $region90: #{tpu_custom_call.1} parent=83 // pred_check_branch
          %1474 = sbr.rel (%p1472) target = $region92
        $region91: #{tpu_custom_call.1} parent=83 // pred_region
          %s1475 = sand.u32 %s29, 1
          %s1476 = scalar_lea.sflag [#allocation13], %s1475
          %s1477 = sand.u32 %s257, 1
          %s1478 = smul.addr %s1477, 2
          %s1479 = scalar_lea.vmem [#allocation14], %s1478
          %1480 = dma.done %s1476, 32
        $region92: #{tpu_custom_call.1} parent=83 // pred_fallthru
          _
      $region84: #{tpu_custom_call.1} parent=5 // pred_fallthru
        _
    $region6: #{tpu_custom_call.1} parent=1 // loop_footer
      %s27 = sadd.s32 1, %s23
    $region7: #{tpu_custom_call.1} parent=1 // loop_footer_branch
      %22 = sbr.rel target = $region3
    $region8: #{tpu_custom_call.1} parent=1 // loop_exit
      _
    %1481 = vsyncpa [#allocation6], 1
    %s1482 = scalar_lea.sflag [#allocation6], 1
    %1483 = vsyncpa %s1482, 1
    %1484 = vsyncpa [#allocation9], 1
    %s1485 = scalar_lea.sflag [#allocation9], 1
    %1486 = vsyncpa %s1485, 1
    %1487 = vsyncpa [#allocation7], 1
    %s1488 = scalar_lea.sflag [#allocation7], 1
    %1489 = vsyncpa %s1488, 1
    %1490 = vsyncpa [#allocation13], 1
    %s1491 = scalar_lea.sflag [#allocation13], 1
    %1492 = vsyncpa %s1491, 1

</llo_original>
